<compile_context>
chip_gen: v5e
topology: v5e:2x2
jax: 0.10.0
libtpu: 0.0.40
codegen_flags: <defaults>
</compile_context>

<pallas_src>
import numpy as np
import jax
import jax.numpy as jnp
from jax import lax
from jax.experimental import pallas as pl
from jax.experimental.pallas import tpu as pltpu


def _make_tap_masks(H, W, dilations):
    """mask[d*9+t, p] = 1 iff output pixel p reads an in-bounds input for tap t, dilation d."""
    HW = H * W
    m = np.zeros((len(dilations) * 9, HW), np.float32)
    for di, d in enumerate(dilations):
        for t in range(9):
            dy, dx = (t // 3 - 1) * d, (t % 3 - 1) * d
            for h in range(H):
                if not (0 <= h + dy < H):
                    continue
                for w in range(W):
                    if 0 <= w + dx < W:
                        m[di * 9 + t, h * W + w] = 1.0
    return jnp.asarray(m)


def _make_sea_kernel(H, W, dilations=(1, 2, 5)):
    HW = H * W

    def kernel(x_ref, mask_ref,
               w1t_ref, b1_ref, w2t_ref, b2_ref,
               wct_ref, bc_ref,
               k1t_ref, kb1_ref, k2t_ref, kb2_ref, k3t_ref, kb3_ref,
               w4_ref, b4_ref,
               o_ref, cat_ref, vc_ref):
        x = x_ref[0].astype(jnp.float32)                 # (C, HW)

        # ---------------- channel attention ----------------
        # Batch the avg- and max-pooled vectors into one (C, 2) slab -> one FC pass.
        vc_ref[:, pl.ds(0, 1)] = jnp.mean(x, axis=1, keepdims=True)
        vc_ref[:, pl.ds(1, 1)] = jnp.max(x, axis=1, keepdims=True)
        v = vc_ref[...]                                  # (C, 2)
        hfc = jnp.maximum(
            jnp.dot(w1t_ref[...], v, preferred_element_type=jnp.float32) + b1_ref[...],
            0.0)                                         # (r, 2)
        fc = jnp.dot(w2t_ref[...], hfc, preferred_element_type=jnp.float32) + b2_ref[...]  # (C, 2)
        ch_att = fc[:, 0:1] + fc[:, 1:2]                 # (C, 1)

        # ---------------- spatial attention ----------------
        # cat = [avg, max, compress] built directly in a (r, HW) scratch (HW on lanes).
        r = cat_ref.shape[0]
        cat_ref[pl.ds(0, 1), :] = jnp.mean(x, axis=0, keepdims=True)
        cat_ref[pl.ds(1, 1), :] = jnp.max(x, axis=0, keepdims=True)
        cat_ref[pl.ds(2, r - 2), :] = (
            jnp.dot(wct_ref[...], x, preferred_element_type=jnp.float32) + bc_ref[...])
        y = cat_ref[...]                                 # (r, HW)

        def dil_conv(yin, kt_ref, kb_ref, d_idx):
            d = dilations[d_idx]
            r_out = kb_ref.shape[0]
            # One fused matmul for all 9 taps: (9*r_out, r_in) x (r_in, HW).
            h_all = jnp.dot(kt_ref[...], yin, preferred_element_type=jnp.float32)
            acc = jnp.zeros((r_out, HW), jnp.float32)
            for t in range(9):
                dy = (t // 3 - 1) * d
                dx = (t % 3 - 1) * d
                ht = h_all[t * r_out:(t + 1) * r_out, :]          # (r_out, HW)
                if dy == 0 and dx == 0:
                    acc = acc + ht
                else:
                    off = dy * W + dx
                    # roll on the lane axis (XLU) replaces the old (HW,HW) shift matmul
                    ht = pltpu.roll(ht, shift=(-off) % HW, axis=1)
                    m = mask_ref[pl.ds(d_idx * 9 + t, 1), :]      # (1, HW) boundary mask
                    acc = acc + ht * m
            return jnp.maximum(acc + kb_ref[...], 0.0)

        y = dil_conv(y, k1t_ref, kb1_ref, 0)             # dilation 1
        y = dil_conv(y, k2t_ref, kb2_ref, 1)             # dilation 2
        y = dil_conv(y, k3t_ref, kb3_ref, 2)             # dilation 5

        sp_att = jnp.dot(w4_ref[...], y, preferred_element_type=jnp.float32) + b4_ref[...]  # (1, HW)

        # ---------------- combine: att = 1 + sigmoid(ch * sp); out = att * x ----------------
        z = ch_att * sp_att                              # (C, HW) outer-product broadcast
        att = 1.0 + 1.0 / (1.0 + jnp.exp(-z))
        o_ref[0] = (att * x).astype(o_ref.dtype)

    return kernel


def sea_forward(x_nchw, params):
    B, C, H, W = x_nchw.shape
    HW = H * W
    r = params["w1"].shape[1]

    x_flat = x_nchw.reshape(B, C, HW)                    # NCHW flattened; no transpose needed

    def t_flat(k):                                       # (9, c_in, c_out) -> (9*c_out, c_in)
        return jnp.transpose(k, (0, 2, 1)).reshape(-1, k.shape[1])

    args = (
        x_flat,
        params["masks"],                                 # (27, HW) tap boundary masks
        jnp.transpose(params["w1"]),                     # (r, C)
        jnp.reshape(params["b1"], (r, 1)),
        jnp.transpose(params["w2"]),                     # (C, r)
        jnp.reshape(params["b2"], (C, 1)),
        jnp.transpose(params["wc"]),                     # (r-2, C)
        jnp.reshape(params["bc"], (r - 2, 1)),
        t_flat(params["k1"]), jnp.reshape(params["kb1"], (r, 1)),
        t_flat(params["k2"]), jnp.reshape(params["kb2"], (r, 1)),
        t_flat(params["k3"]), jnp.reshape(params["kb3"], (r, 1)),
        params["w4"],                                    # (1, r)
        params["b4"],                                    # (1, 1)
    )

    def const_spec(a):
        nd = a.ndim
        return pl.BlockSpec(a.shape, lambda b, _n=nd: (0,) * _n)

    in_specs = [pl.BlockSpec((1, C, HW), lambda b: (b, 0, 0))]
    in_specs += [const_spec(a) for a in args[1:]]

    out = pl.pallas_call(
        _make_sea_kernel(H, W),
        out_shape=jax.ShapeDtypeStruct((B, C, HW), x_nchw.dtype),
        grid_spec=pltpu.PrefetchScalarGridSpec(
            num_scalar_prefetch=0,
            grid=(B,),
            in_specs=in_specs,
            out_specs=pl.BlockSpec((1, C, HW), lambda b: (b, 0, 0)),
            scratch_shapes=[pltpu.VMEM((r, HW), jnp.float32),    # cat buffer (r, HW)
                            pltpu.VMEM((C, 2), jnp.float32)],    # [avg_c | max_c]
        ),
        compiler_params=pltpu.CompilerParams(
            dimension_semantics=("parallel",),
        ),
    )(*args)

    # TODO(synk): if B == 1 on a 2-TC chip (v7x), split HW over a leading parallel
    # grid axis (two-pass channel mean/max) to use both TensorCores.
    return out.reshape(B, C, H, W)


def init_params(key, C, H, W, reduction=16):
    r = C // reduction
    assert r >= 3, "SpatialAttention needs num_features // 16 >= 3"
    ks = jax.random.split(key, 14)
    s = 0.2
    p = {
        # ChannelAttention FC: Linear(C, r) -> ReLU -> Linear(r, C)
        "w1": jax.random.normal(ks[0], (C, r), jnp.float32) * s,
        "b1": jax.random.normal(ks[1], (1, r), jnp.float32) * s,
        "w2": jax.random.normal(ks[2], (r, C), jnp.float32) * s,
        "b2": jax.random.normal(ks[3], (1, C), jnp.float32) * s,
        # SpatialAttention compress 1x1 conv: C -> r-2
        "wc": jax.random.normal(ks[4], (C, r - 2), jnp.float32) * s,
        "bc": jax.random.normal(ks[5], (1, r - 2), jnp.float32) * s,
        # dilated 3x3 convs, weights stored as (tap=ky*3+kx, c_in, c_out)
        "k1": jax.random.normal(ks[6], (9, r, r), jnp.float32) * s,
        "kb1": jax.random.normal(ks[7], (1, r), jnp.float32) * s,
        "k2": jax.random.normal(ks[8], (9, r, r), jnp.float32) * s,
        "kb2": jax.random.normal(ks[9], (1, r), jnp.float32) * s,
        "k3": jax.random.normal(ks[10], (9, r, r), jnp.float32) * s,
        "kb3": jax.random.normal(ks[11], (1, r), jnp.float32) * s,
        # final 1x1 conv r -> 1 (stored as (1, r))
        "w4": jax.random.normal(ks[12], (1, r), jnp.float32) * s,
        "b4": jax.random.normal(ks[13], (1, 1), jnp.float32) * s,
        # per-tap boundary masks for dilations (1, 2, 5)  — O(27*HW), not O(27*HW^2)
        "masks": _make_tap_masks(H, W, (1, 2, 5)),
    }
    return p


def sea_reference(x, p):
    """Pure-JAX reference mirroring the PyTorch module (NCHW)."""
    B, C, H, W = x.shape
    flat = x.reshape(B, C, H * W)
    avg = flat.mean(axis=2)
    mx = flat.max(axis=2)

    def fc(v):
        h = jnp.maximum(v @ p["w1"] + p["b1"], 0.0)
        return h @ p["w2"] + p["b2"]

    ch = fc(avg) + fc(mx)                                    # (B, C)

    avg_s = x.mean(axis=1, keepdims=True)                    # (B,1,H,W)
    max_s = x.max(axis=1, keepdims=True)
    comp = jnp.einsum("bchw,cd->bdhw", x, p["wc"]) + p["bc"].reshape(1, -1, 1, 1)
    cat = jnp.concatenate([avg_s, max_s, comp], axis=1)      # (B, r, H, W)

    def dconv(xin, w9, b, d, relu=True):
        ci, co = w9.shape[1], w9.shape[2]
        wt = jnp.transpose(w9.reshape(3, 3, ci, co), (3, 2, 0, 1))   # OIHW
        y = lax.conv_general_dilated(
            xin, wt, window_strides=(1, 1), padding=((d, d), (d, d)),
            rhs_dilation=(d, d), dimension_numbers=("NCHW", "OIHW", "NCHW"),
            precision=lax.Precision.HIGHEST)
        y = y + b.reshape(1, -1, 1, 1)
        return jnp.maximum(y, 0.0) if relu else y

    y = dconv(cat, p["k1"], p["kb1"], 1)
    y = dconv(y, p["k2"], p["kb2"], 2)
    y = dconv(y, p["k3"], p["kb3"], 5)
    sp = jnp.einsum("bchw,c->bhw", y, p["w4"][0])[:, None] + p["b4"].reshape(1, 1, 1, 1)
    att = 1.0 + jax.nn.sigmoid(ch[:, :, None, None] * sp)
    return att * x


if __name__ == "__main__":
    B, C, H, W = 2, 64, 16, 16      # num_features must be >= 48 for reduction_ratio=16
    key = jax.random.PRNGKey(0)
    kx, kp = jax.random.split(key)
    x = jax.random.normal(kx, (B, C, H, W), jnp.float32)
    params = init_params(kp, C, H, W)

    out = jax.jit(sea_forward)(x, params)
    out = jax.block_until_ready(out)

    ref = sea_reference(x, params)
    err = float(jnp.max(jnp.abs(out - ref)))
    assert out.shape == x.shape and out.dtype == x.dtype
    if err > 5e-3:
        raise AssertionError(f"Pallas kernel mismatch vs reference: max abs err {err}")
    print("KERNEL_OK")
</pallas_src>

<mosaic_0001>
module attributes {stable_mosaic.version = 11 : i64} {
  func.func @kernel(%arg0: i32, %arg1: memref<1x64x256xf32, #tpu.memory_space<vmem>>, %arg2: memref<27x256xf32, #tpu.memory_space<vmem>>, %arg3: memref<4x64xf32, #tpu.memory_space<vmem>>, %arg4: memref<4x1xf32, #tpu.memory_space<vmem>>, %arg5: memref<64x4xf32, #tpu.memory_space<vmem>>, %arg6: memref<64x1xf32, #tpu.memory_space<vmem>>, %arg7: memref<2x64xf32, #tpu.memory_space<vmem>>, %arg8: memref<2x1xf32, #tpu.memory_space<vmem>>, %arg9: memref<36x4xf32, #tpu.memory_space<vmem>>, %arg10: memref<4x1xf32, #tpu.memory_space<vmem>>, %arg11: memref<36x4xf32, #tpu.memory_space<vmem>>, %arg12: memref<4x1xf32, #tpu.memory_space<vmem>>, %arg13: memref<36x4xf32, #tpu.memory_space<vmem>>, %arg14: memref<4x1xf32, #tpu.memory_space<vmem>>, %arg15: memref<1x4xf32, #tpu.memory_space<vmem>>, %arg16: memref<1x1xf32, #tpu.memory_space<vmem>>, %arg17: memref<1x64x256xf32, #tpu.memory_space<vmem>>, %arg18: memref<4x256xf32, #tpu.memory_space<vmem>>, %arg19: memref<64x2xf32, #tpu.memory_space<vmem>>) attributes {dimension_semantics = [#tpu.dimension_semantics<parallel>], iteration_bounds = array<i64: 2>, scalar_prefetch = 0 : i64, scratch_operands = 2 : i64, tpu.core_type = #tpu.core_type<tc>, window_params = [{transform_indices = @transform_0, window_bounds = array<i64: 1, 64, 256>}, {pipeline_mode = #tpu.pipeline_mode<synchronous>, transform_indices = @transform_1, window_bounds = array<i64: 27, 256>}, {pipeline_mode = #tpu.pipeline_mode<synchronous>, transform_indices = @transform_2, window_bounds = array<i64: 4, 64>}, {pipeline_mode = #tpu.pipeline_mode<synchronous>, transform_indices = @transform_3, window_bounds = array<i64: 4, 1>}, {pipeline_mode = #tpu.pipeline_mode<synchronous>, transform_indices = @transform_4, window_bounds = array<i64: 64, 4>}, {pipeline_mode = #tpu.pipeline_mode<synchronous>, transform_indices = @transform_5, window_bounds = array<i64: 64, 1>}, {pipeline_mode = #tpu.pipeline_mode<synchronous>, transform_indices = @transform_6, window_bounds = array<i64: 2, 64>}, {pipeline_mode = #tpu.pipeline_mode<synchronous>, transform_indices = @transform_7, window_bounds = array<i64: 2, 1>}, {pipeline_mode = #tpu.pipeline_mode<synchronous>, transform_indices = @transform_8, window_bounds = array<i64: 36, 4>}, {pipeline_mode = #tpu.pipeline_mode<synchronous>, transform_indices = @transform_9, window_bounds = array<i64: 4, 1>}, {pipeline_mode = #tpu.pipeline_mode<synchronous>, transform_indices = @transform_10, window_bounds = array<i64: 36, 4>}, {pipeline_mode = #tpu.pipeline_mode<synchronous>, transform_indices = @transform_11, window_bounds = array<i64: 4, 1>}, {pipeline_mode = #tpu.pipeline_mode<synchronous>, transform_indices = @transform_12, window_bounds = array<i64: 36, 4>}, {pipeline_mode = #tpu.pipeline_mode<synchronous>, transform_indices = @transform_13, window_bounds = array<i64: 4, 1>}, {pipeline_mode = #tpu.pipeline_mode<synchronous>, transform_indices = @transform_14, window_bounds = array<i64: 1, 4>}, {pipeline_mode = #tpu.pipeline_mode<synchronous>, transform_indices = @transform_15, window_bounds = array<i64: 1, 1>}, {transform_indices = @transform_16, window_bounds = array<i64: 1, 64, 256>}]} {
    %c0 = arith.constant 0 : index
    %c0_0 = arith.constant 0 : index
    %c0_1 = arith.constant 0 : index
    %0 = vector.load %arg1[%c0, %c0_0, %c0_1] : memref<1x64x256xf32, #tpu.memory_space<vmem>>, vector<1x64x256xf32>
    %1 = vector.shape_cast %0 : vector<1x64x256xf32> to vector<64x256xf32>
    %cst = arith.constant dense<0.000000e+00> : vector<64xf32>
    %2 = vector.multi_reduction <add>, %1, %cst [1] : vector<64x256xf32> to vector<64xf32>
    %3 = vector.shape_cast %2 : vector<64xf32> to vector<64x1xf32>
    %cst_2 = arith.constant 2.560000e+02 : f32
    %4 = vector.broadcast %cst_2 : f32 to vector<64x1xf32>
    %5 = arith.divf %3, %4 : vector<64x1xf32>
    %c0_3 = arith.constant 0 : index
    %c0_4 = arith.constant 0 : index
    %6 = vector.load %arg19[%c0_3, %c0_4] : memref<64x2xf32, #tpu.memory_space<vmem>>, vector<64x1xf32>
    tpu.vector_store %arg19[%c0_3, %c0_4], %5 {strides = array<i32>} : memref<64x2xf32, #tpu.memory_space<vmem>>, vector<64x1xf32>,
    %cst_5 = arith.constant dense<0xFF800000> : vector<64xf32>
    %7 = vector.multi_reduction <maximumf>, %1, %cst_5 [1] : vector<64x256xf32> to vector<64xf32>
    %8 = vector.shape_cast %7 : vector<64xf32> to vector<64x1xf32>
    %c0_6 = arith.constant 0 : index
    %c1 = arith.constant 1 : index
    %9 = vector.load %arg19[%c0_6, %c1] : memref<64x2xf32, #tpu.memory_space<vmem>>, vector<64x1xf32>
    tpu.vector_store %arg19[%c0_6, %c1], %8 {strides = array<i32>} : memref<64x2xf32, #tpu.memory_space<vmem>>, vector<64x1xf32>,
    %c0_7 = arith.constant 0 : index
    %c0_8 = arith.constant 0 : index
    %10 = vector.load %arg19[%c0_7, %c0_8] : memref<64x2xf32, #tpu.memory_space<vmem>>, vector<64x2xf32>
    %c0_9 = arith.constant 0 : index
    %c0_10 = arith.constant 0 : index
    %11 = vector.load %arg3[%c0_9, %c0_10] : memref<4x64xf32, #tpu.memory_space<vmem>>, vector<4x64xf32>
    %cst_11 = arith.constant dense<0.000000e+00> : vector<4x2xf32>
    %12 = tpu.matmul %11, %10, %cst_11 {dimension_numbers = #tpu.dot_dimension_numbers<[1], [0], [0], [1], [0, 0, 1, 1], [], []>} : vector<4x64xf32>, vector<64x2xf32>, vector<4x2xf32> -> vector<4x2xf32>
    %c0_12 = arith.constant 0 : index
    %c0_13 = arith.constant 0 : index
    %13 = vector.load %arg4[%c0_12, %c0_13] : memref<4x1xf32, #tpu.memory_space<vmem>>, vector<4x1xf32>
    %14 = vector.broadcast %13 : vector<4x1xf32> to vector<4x2xf32>
    %15 = arith.addf %12, %14 : vector<4x2xf32>
    %cst_14 = arith.constant 0.000000e+00 : f32
    %16 = vector.broadcast %cst_14 : f32 to vector<4x2xf32>
    %17 = arith.maximumf %15, %16 : vector<4x2xf32>
    %c0_15 = arith.constant 0 : index
    %c0_16 = arith.constant 0 : index
    %18 = vector.load %arg5[%c0_15, %c0_16] : memref<64x4xf32, #tpu.memory_space<vmem>>, vector<64x4xf32>
    %cst_17 = arith.constant dense<0.000000e+00> : vector<64x2xf32>
    %19 = tpu.matmul %18, %17, %cst_17 {dimension_numbers = #tpu.dot_dimension_numbers<[1], [0], [0], [1], [0, 0, 1, 1], [], []>} : vector<64x4xf32>, vector<4x2xf32>, vector<64x2xf32> -> vector<64x2xf32>
    %c0_18 = arith.constant 0 : index
    %c0_19 = arith.constant 0 : index
    %20 = vector.load %arg6[%c0_18, %c0_19] : memref<64x1xf32, #tpu.memory_space<vmem>>, vector<64x1xf32>
    %21 = vector.broadcast %20 : vector<64x1xf32> to vector<64x2xf32>
    %22 = arith.addf %19, %21 : vector<64x2xf32>
    %23 = vector.extract_strided_slice %22 {offsets = [0, 0], sizes = [64, 1], strides = [1, 1]} : vector<64x2xf32> to vector<64x1xf32>
    %24 = vector.extract_strided_slice %22 {offsets = [0, 1], sizes = [64, 1], strides = [1, 1]} : vector<64x2xf32> to vector<64x1xf32>
    %25 = arith.addf %23, %24 : vector<64x1xf32>
    %cst_20 = arith.constant dense<0.000000e+00> : vector<256xf32>
    %26 = vector.multi_reduction <add>, %1, %cst_20 [0] : vector<64x256xf32> to vector<256xf32>
    %27 = vector.shape_cast %26 : vector<256xf32> to vector<1x256xf32>
    %cst_21 = arith.constant 6.400000e+01 : f32
    %28 = vector.broadcast %cst_21 : f32 to vector<1x256xf32>
    %29 = arith.divf %27, %28 : vector<1x256xf32>
    %c0_22 = arith.constant 0 : index
    %c0_23 = arith.constant 0 : index
    %30 = vector.load %arg18[%c0_22, %c0_23] : memref<4x256xf32, #tpu.memory_space<vmem>>, vector<1x256xf32>
    tpu.vector_store %arg18[%c0_22, %c0_23], %29 {strides = array<i32>} : memref<4x256xf32, #tpu.memory_space<vmem>>, vector<1x256xf32>,
    %cst_24 = arith.constant dense<0xFF800000> : vector<256xf32>
    %31 = vector.multi_reduction <maximumf>, %1, %cst_24 [0] : vector<64x256xf32> to vector<256xf32>
    %32 = vector.shape_cast %31 : vector<256xf32> to vector<1x256xf32>
    %c1_25 = arith.constant 1 : index
    %c0_26 = arith.constant 0 : index
    %33 = vector.load %arg18[%c1_25, %c0_26] : memref<4x256xf32, #tpu.memory_space<vmem>>, vector<1x256xf32>
    tpu.vector_store %arg18[%c1_25, %c0_26], %32 {strides = array<i32>} : memref<4x256xf32, #tpu.memory_space<vmem>>, vector<1x256xf32>,
    %c0_27 = arith.constant 0 : index
    %c0_28 = arith.constant 0 : index
    %34 = vector.load %arg7[%c0_27, %c0_28] : memref<2x64xf32, #tpu.memory_space<vmem>>, vector<2x64xf32>
    %cst_29 = arith.constant dense<0.000000e+00> : vector<2x256xf32>
    %35 = tpu.matmul %34, %1, %cst_29 {dimension_numbers = #tpu.dot_dimension_numbers<[1], [0], [0], [1], [0, 0, 1, 1], [], []>} : vector<2x64xf32>, vector<64x256xf32>, vector<2x256xf32> -> vector<2x256xf32>
    %c0_30 = arith.constant 0 : index
    %c0_31 = arith.constant 0 : index
    %36 = vector.load %arg8[%c0_30, %c0_31] : memref<2x1xf32, #tpu.memory_space<vmem>>, vector<2x1xf32>
    %37 = vector.broadcast %36 : vector<2x1xf32> to vector<2x256xf32>
    %38 = arith.addf %35, %37 : vector<2x256xf32>
    %c2 = arith.constant 2 : index
    %c0_32 = arith.constant 0 : index
    %39 = vector.load %arg18[%c2, %c0_32] : memref<4x256xf32, #tpu.memory_space<vmem>>, vector<2x256xf32>
    tpu.vector_store %arg18[%c2, %c0_32], %38 {strides = array<i32>} : memref<4x256xf32, #tpu.memory_space<vmem>>, vector<2x256xf32>,
    %c0_33 = arith.constant 0 : index
    %c0_34 = arith.constant 0 : index
    %40 = vector.load %arg18[%c0_33, %c0_34] : memref<4x256xf32, #tpu.memory_space<vmem>>, vector<4x256xf32>
    %c0_35 = arith.constant 0 : index
    %c0_36 = arith.constant 0 : index
    %41 = vector.load %arg9[%c0_35, %c0_36] : memref<36x4xf32, #tpu.memory_space<vmem>>, vector<36x4xf32>
    %cst_37 = arith.constant dense<0.000000e+00> : vector<36x256xf32>
    %42 = tpu.matmul %41, %40, %cst_37 {dimension_numbers = #tpu.dot_dimension_numbers<[1], [0], [0], [1], [0, 0, 1, 1], [], []>} : vector<36x4xf32>, vector<4x256xf32>, vector<36x256xf32> -> vector<36x256xf32>
    %cst_38 = arith.constant 0.000000e+00 : f32
    %43 = vector.broadcast %cst_38 : f32 to vector<4x256xf32>
    %44 = vector.extract_strided_slice %42 {offsets = [0, 0], sizes = [4, 256], strides = [1, 1]} : vector<36x256xf32> to vector<4x256xf32>
    %c17_i32 = arith.constant 17 : i32
    %45 = tpu.dynamic_rotate %44 by %c17_i32 dim 1 : vector<4x256xf32>, i32 -> vector<4x256xf32>
    %c0_39 = arith.constant 0 : index
    %c0_40 = arith.constant 0 : index
    %46 = vector.load %arg2[%c0_39, %c0_40] : memref<27x256xf32, #tpu.memory_space<vmem>>, vector<1x256xf32>
    %47 = vector.broadcast %46 : vector<1x256xf32> to vector<4x256xf32>
    %48 = arith.mulf %45, %47 : vector<4x256xf32>
    %49 = arith.addf %43, %48 : vector<4x256xf32>
    %50 = vector.extract_strided_slice %42 {offsets = [4, 0], sizes = [4, 256], strides = [1, 1]} : vector<36x256xf32> to vector<4x256xf32>
    %c16_i32 = arith.constant 16 : i32
    %51 = tpu.dynamic_rotate %50 by %c16_i32 dim 1 : vector<4x256xf32>, i32 -> vector<4x256xf32>
    %c1_41 = arith.constant 1 : index
    %c0_42 = arith.constant 0 : index
    %52 = vector.load %arg2[%c1_41, %c0_42] : memref<27x256xf32, #tpu.memory_space<vmem>>, vector<1x256xf32>
    %53 = vector.broadcast %52 : vector<1x256xf32> to vector<4x256xf32>
    %54 = arith.mulf %51, %53 : vector<4x256xf32>
    %55 = arith.addf %49, %54 : vector<4x256xf32>
    %56 = vector.extract_strided_slice %42 {offsets = [8, 0], sizes = [4, 256], strides = [1, 1]} : vector<36x256xf32> to vector<4x256xf32>
    %c15_i32 = arith.constant 15 : i32
    %57 = tpu.dynamic_rotate %56 by %c15_i32 dim 1 : vector<4x256xf32>, i32 -> vector<4x256xf32>
    %c2_43 = arith.constant 2 : index
    %c0_44 = arith.constant 0 : index
    %58 = vector.load %arg2[%c2_43, %c0_44] : memref<27x256xf32, #tpu.memory_space<vmem>>, vector<1x256xf32>
    %59 = vector.broadcast %58 : vector<1x256xf32> to vector<4x256xf32>
    %60 = arith.mulf %57, %59 : vector<4x256xf32>
    %61 = arith.addf %55, %60 : vector<4x256xf32>
    %62 = vector.extract_strided_slice %42 {offsets = [12, 0], sizes = [4, 256], strides = [1, 1]} : vector<36x256xf32> to vector<4x256xf32>
    %c1_i32 = arith.constant 1 : i32
    %63 = tpu.dynamic_rotate %62 by %c1_i32 dim 1 : vector<4x256xf32>, i32 -> vector<4x256xf32>
    %c3 = arith.constant 3 : index
    %c0_45 = arith.constant 0 : index
    %64 = vector.load %arg2[%c3, %c0_45] : memref<27x256xf32, #tpu.memory_space<vmem>>, vector<1x256xf32>
    %65 = vector.broadcast %64 : vector<1x256xf32> to vector<4x256xf32>
    %66 = arith.mulf %63, %65 : vector<4x256xf32>
    %67 = arith.addf %61, %66 : vector<4x256xf32>
    %68 = vector.extract_strided_slice %42 {offsets = [16, 0], sizes = [4, 256], strides = [1, 1]} : vector<36x256xf32> to vector<4x256xf32>
    %69 = arith.addf %67, %68 : vector<4x256xf32>
    %70 = vector.extract_strided_slice %42 {offsets = [20, 0], sizes = [4, 256], strides = [1, 1]} : vector<36x256xf32> to vector<4x256xf32>
    %c255_i32 = arith.constant 255 : i32
    %71 = tpu.dynamic_rotate %70 by %c255_i32 dim 1 : vector<4x256xf32>, i32 -> vector<4x256xf32>
    %c5 = arith.constant 5 : index
    %c0_46 = arith.constant 0 : index
    %72 = vector.load %arg2[%c5, %c0_46] : memref<27x256xf32, #tpu.memory_space<vmem>>, vector<1x256xf32>
    %73 = vector.broadcast %72 : vector<1x256xf32> to vector<4x256xf32>
    %74 = arith.mulf %71, %73 : vector<4x256xf32>
    %75 = arith.addf %69, %74 : vector<4x256xf32>
    %76 = vector.extract_strided_slice %42 {offsets = [24, 0], sizes = [4, 256], strides = [1, 1]} : vector<36x256xf32> to vector<4x256xf32>
    %c241_i32 = arith.constant 241 : i32
    %77 = tpu.dynamic_rotate %76 by %c241_i32 dim 1 : vector<4x256xf32>, i32 -> vector<4x256xf32>
    %c6 = arith.constant 6 : index
    %c0_47 = arith.constant 0 : index
    %78 = vector.load %arg2[%c6, %c0_47] : memref<27x256xf32, #tpu.memory_space<vmem>>, vector<1x256xf32>
    %79 = vector.broadcast %78 : vector<1x256xf32> to vector<4x256xf32>
    %80 = arith.mulf %77, %79 : vector<4x256xf32>
    %81 = arith.addf %75, %80 : vector<4x256xf32>
    %82 = vector.extract_strided_slice %42 {offsets = [28, 0], sizes = [4, 256], strides = [1, 1]} : vector<36x256xf32> to vector<4x256xf32>
    %c240_i32 = arith.constant 240 : i32
    %83 = tpu.dynamic_rotate %82 by %c240_i32 dim 1 : vector<4x256xf32>, i32 -> vector<4x256xf32>
    %c7 = arith.constant 7 : index
    %c0_48 = arith.constant 0 : index
    %84 = vector.load %arg2[%c7, %c0_48] : memref<27x256xf32, #tpu.memory_space<vmem>>, vector<1x256xf32>
    %85 = vector.broadcast %84 : vector<1x256xf32> to vector<4x256xf32>
    %86 = arith.mulf %83, %85 : vector<4x256xf32>
    %87 = arith.addf %81, %86 : vector<4x256xf32>
    %88 = vector.extract_strided_slice %42 {offsets = [32, 0], sizes = [4, 256], strides = [1, 1]} : vector<36x256xf32> to vector<4x256xf32>
    %c239_i32 = arith.constant 239 : i32
    %89 = tpu.dynamic_rotate %88 by %c239_i32 dim 1 : vector<4x256xf32>, i32 -> vector<4x256xf32>
    %c8 = arith.constant 8 : index
    %c0_49 = arith.constant 0 : index
    %90 = vector.load %arg2[%c8, %c0_49] : memref<27x256xf32, #tpu.memory_space<vmem>>, vector<1x256xf32>
    %91 = vector.broadcast %90 : vector<1x256xf32> to vector<4x256xf32>
    %92 = arith.mulf %89, %91 : vector<4x256xf32>
    %93 = arith.addf %87, %92 : vector<4x256xf32>
    %c0_50 = arith.constant 0 : index
    %c0_51 = arith.constant 0 : index
    %94 = vector.load %arg10[%c0_50, %c0_51] : memref<4x1xf32, #tpu.memory_space<vmem>>, vector<4x1xf32>
    %95 = vector.broadcast %94 : vector<4x1xf32> to vector<4x256xf32>
    %96 = arith.addf %93, %95 : vector<4x256xf32>
    %cst_52 = arith.constant 0.000000e+00 : f32
    %97 = vector.broadcast %cst_52 : f32 to vector<4x256xf32>
    %98 = arith.maximumf %96, %97 : vector<4x256xf32>
    %c0_53 = arith.constant 0 : index
    %c0_54 = arith.constant 0 : index
    %99 = vector.load %arg11[%c0_53, %c0_54] : memref<36x4xf32, #tpu.memory_space<vmem>>, vector<36x4xf32>
    %cst_55 = arith.constant dense<0.000000e+00> : vector<36x256xf32>
    %100 = tpu.matmul %99, %98, %cst_55 {dimension_numbers = #tpu.dot_dimension_numbers<[1], [0], [0], [1], [0, 0, 1, 1], [], []>} : vector<36x4xf32>, vector<4x256xf32>, vector<36x256xf32> -> vector<36x256xf32>
    %cst_56 = arith.constant 0.000000e+00 : f32
    %101 = vector.broadcast %cst_56 : f32 to vector<4x256xf32>
    %102 = vector.extract_strided_slice %100 {offsets = [0, 0], sizes = [4, 256], strides = [1, 1]} : vector<36x256xf32> to vector<4x256xf32>
    %c34_i32 = arith.constant 34 : i32
    %103 = tpu.dynamic_rotate %102 by %c34_i32 dim 1 : vector<4x256xf32>, i32 -> vector<4x256xf32>
    %c9 = arith.constant 9 : index
    %c0_57 = arith.constant 0 : index
    %104 = vector.load %arg2[%c9, %c0_57] : memref<27x256xf32, #tpu.memory_space<vmem>>, vector<1x256xf32>
    %105 = vector.broadcast %104 : vector<1x256xf32> to vector<4x256xf32>
    %106 = arith.mulf %103, %105 : vector<4x256xf32>
    %107 = arith.addf %101, %106 : vector<4x256xf32>
    %108 = vector.extract_strided_slice %100 {offsets = [4, 0], sizes = [4, 256], strides = [1, 1]} : vector<36x256xf32> to vector<4x256xf32>
    %c32_i32 = arith.constant 32 : i32
    %109 = tpu.dynamic_rotate %108 by %c32_i32 dim 1 : vector<4x256xf32>, i32 -> vector<4x256xf32>
    %c10 = arith.constant 10 : index
    %c0_58 = arith.constant 0 : index
    %110 = vector.load %arg2[%c10, %c0_58] : memref<27x256xf32, #tpu.memory_space<vmem>>, vector<1x256xf32>
    %111 = vector.broadcast %110 : vector<1x256xf32> to vector<4x256xf32>
    %112 = arith.mulf %109, %111 : vector<4x256xf32>
    %113 = arith.addf %107, %112 : vector<4x256xf32>
    %114 = vector.extract_strided_slice %100 {offsets = [8, 0], sizes = [4, 256], strides = [1, 1]} : vector<36x256xf32> to vector<4x256xf32>
    %c30_i32 = arith.constant 30 : i32
    %115 = tpu.dynamic_rotate %114 by %c30_i32 dim 1 : vector<4x256xf32>, i32 -> vector<4x256xf32>
    %c11 = arith.constant 11 : index
    %c0_59 = arith.constant 0 : index
    %116 = vector.load %arg2[%c11, %c0_59] : memref<27x256xf32, #tpu.memory_space<vmem>>, vector<1x256xf32>
    %117 = vector.broadcast %116 : vector<1x256xf32> to vector<4x256xf32>
    %118 = arith.mulf %115, %117 : vector<4x256xf32>
    %119 = arith.addf %113, %118 : vector<4x256xf32>
    %120 = vector.extract_strided_slice %100 {offsets = [12, 0], sizes = [4, 256], strides = [1, 1]} : vector<36x256xf32> to vector<4x256xf32>
    %c2_i32 = arith.constant 2 : i32
    %121 = tpu.dynamic_rotate %120 by %c2_i32 dim 1 : vector<4x256xf32>, i32 -> vector<4x256xf32>
    %c12 = arith.constant 12 : index
    %c0_60 = arith.constant 0 : index
    %122 = vector.load %arg2[%c12, %c0_60] : memref<27x256xf32, #tpu.memory_space<vmem>>, vector<1x256xf32>
    %123 = vector.broadcast %122 : vector<1x256xf32> to vector<4x256xf32>
    %124 = arith.mulf %121, %123 : vector<4x256xf32>
    %125 = arith.addf %119, %124 : vector<4x256xf32>
    %126 = vector.extract_strided_slice %100 {offsets = [16, 0], sizes = [4, 256], strides = [1, 1]} : vector<36x256xf32> to vector<4x256xf32>
    %127 = arith.addf %125, %126 : vector<4x256xf32>
    %128 = vector.extract_strided_slice %100 {offsets = [20, 0], sizes = [4, 256], strides = [1, 1]} : vector<36x256xf32> to vector<4x256xf32>
    %c254_i32 = arith.constant 254 : i32
    %129 = tpu.dynamic_rotate %128 by %c254_i32 dim 1 : vector<4x256xf32>, i32 -> vector<4x256xf32>
    %c14 = arith.constant 14 : index
    %c0_61 = arith.constant 0 : index
    %130 = vector.load %arg2[%c14, %c0_61] : memref<27x256xf32, #tpu.memory_space<vmem>>, vector<1x256xf32>
    %131 = vector.broadcast %130 : vector<1x256xf32> to vector<4x256xf32>
    %132 = arith.mulf %129, %131 : vector<4x256xf32>
    %133 = arith.addf %127, %132 : vector<4x256xf32>
    %134 = vector.extract_strided_slice %100 {offsets = [24, 0], sizes = [4, 256], strides = [1, 1]} : vector<36x256xf32> to vector<4x256xf32>
    %c226_i32 = arith.constant 226 : i32
    %135 = tpu.dynamic_rotate %134 by %c226_i32 dim 1 : vector<4x256xf32>, i32 -> vector<4x256xf32>
    %c15 = arith.constant 15 : index
    %c0_62 = arith.constant 0 : index
    %136 = vector.load %arg2[%c15, %c0_62] : memref<27x256xf32, #tpu.memory_space<vmem>>, vector<1x256xf32>
    %137 = vector.broadcast %136 : vector<1x256xf32> to vector<4x256xf32>
    %138 = arith.mulf %135, %137 : vector<4x256xf32>
    %139 = arith.addf %133, %138 : vector<4x256xf32>
    %140 = vector.extract_strided_slice %100 {offsets = [28, 0], sizes = [4, 256], strides = [1, 1]} : vector<36x256xf32> to vector<4x256xf32>
    %c224_i32 = arith.constant 224 : i32
    %141 = tpu.dynamic_rotate %140 by %c224_i32 dim 1 : vector<4x256xf32>, i32 -> vector<4x256xf32>
    %c16 = arith.constant 16 : index
    %c0_63 = arith.constant 0 : index
    %142 = vector.load %arg2[%c16, %c0_63] : memref<27x256xf32, #tpu.memory_space<vmem>>, vector<1x256xf32>
    %143 = vector.broadcast %142 : vector<1x256xf32> to vector<4x256xf32>
    %144 = arith.mulf %141, %143 : vector<4x256xf32>
    %145 = arith.addf %139, %144 : vector<4x256xf32>
    %146 = vector.extract_strided_slice %100 {offsets = [32, 0], sizes = [4, 256], strides = [1, 1]} : vector<36x256xf32> to vector<4x256xf32>
    %c222_i32 = arith.constant 222 : i32
    %147 = tpu.dynamic_rotate %146 by %c222_i32 dim 1 : vector<4x256xf32>, i32 -> vector<4x256xf32>
    %c17 = arith.constant 17 : index
    %c0_64 = arith.constant 0 : index
    %148 = vector.load %arg2[%c17, %c0_64] : memref<27x256xf32, #tpu.memory_space<vmem>>, vector<1x256xf32>
    %149 = vector.broadcast %148 : vector<1x256xf32> to vector<4x256xf32>
    %150 = arith.mulf %147, %149 : vector<4x256xf32>
    %151 = arith.addf %145, %150 : vector<4x256xf32>
    %c0_65 = arith.constant 0 : index
    %c0_66 = arith.constant 0 : index
    %152 = vector.load %arg12[%c0_65, %c0_66] : memref<4x1xf32, #tpu.memory_space<vmem>>, vector<4x1xf32>
    %153 = vector.broadcast %152 : vector<4x1xf32> to vector<4x256xf32>
    %154 = arith.addf %151, %153 : vector<4x256xf32>
    %cst_67 = arith.constant 0.000000e+00 : f32
    %155 = vector.broadcast %cst_67 : f32 to vector<4x256xf32>
    %156 = arith.maximumf %154, %155 : vector<4x256xf32>
    %c0_68 = arith.constant 0 : index
    %c0_69 = arith.constant 0 : index
    %157 = vector.load %arg13[%c0_68, %c0_69] : memref<36x4xf32, #tpu.memory_space<vmem>>, vector<36x4xf32>
    %cst_70 = arith.constant dense<0.000000e+00> : vector<36x256xf32>
    %158 = tpu.matmul %157, %156, %cst_70 {dimension_numbers = #tpu.dot_dimension_numbers<[1], [0], [0], [1], [0, 0, 1, 1], [], []>} : vector<36x4xf32>, vector<4x256xf32>, vector<36x256xf32> -> vector<36x256xf32>
    %cst_71 = arith.constant 0.000000e+00 : f32
    %159 = vector.broadcast %cst_71 : f32 to vector<4x256xf32>
    %160 = vector.extract_strided_slice %158 {offsets = [0, 0], sizes = [4, 256], strides = [1, 1]} : vector<36x256xf32> to vector<4x256xf32>
    %c85_i32 = arith.constant 85 : i32
    %161 = tpu.dynamic_rotate %160 by %c85_i32 dim 1 : vector<4x256xf32>, i32 -> vector<4x256xf32>
    %c18 = arith.constant 18 : index
    %c0_72 = arith.constant 0 : index
    %162 = vector.load %arg2[%c18, %c0_72] : memref<27x256xf32, #tpu.memory_space<vmem>>, vector<1x256xf32>
    %163 = vector.broadcast %162 : vector<1x256xf32> to vector<4x256xf32>
    %164 = arith.mulf %161, %163 : vector<4x256xf32>
    %165 = arith.addf %159, %164 : vector<4x256xf32>
    %166 = vector.extract_strided_slice %158 {offsets = [4, 0], sizes = [4, 256], strides = [1, 1]} : vector<36x256xf32> to vector<4x256xf32>
    %c80_i32 = arith.constant 80 : i32
    %167 = tpu.dynamic_rotate %166 by %c80_i32 dim 1 : vector<4x256xf32>, i32 -> vector<4x256xf32>
    %c19 = arith.constant 19 : index
    %c0_73 = arith.constant 0 : index
    %168 = vector.load %arg2[%c19, %c0_73] : memref<27x256xf32, #tpu.memory_space<vmem>>, vector<1x256xf32>
    %169 = vector.broadcast %168 : vector<1x256xf32> to vector<4x256xf32>
    %170 = arith.mulf %167, %169 : vector<4x256xf32>
    %171 = arith.addf %165, %170 : vector<4x256xf32>
    %172 = vector.extract_strided_slice %158 {offsets = [8, 0], sizes = [4, 256], strides = [1, 1]} : vector<36x256xf32> to vector<4x256xf32>
    %c75_i32 = arith.constant 75 : i32
    %173 = tpu.dynamic_rotate %172 by %c75_i32 dim 1 : vector<4x256xf32>, i32 -> vector<4x256xf32>
    %c20 = arith.constant 20 : index
    %c0_74 = arith.constant 0 : index
    %174 = vector.load %arg2[%c20, %c0_74] : memref<27x256xf32, #tpu.memory_space<vmem>>, vector<1x256xf32>
    %175 = vector.broadcast %174 : vector<1x256xf32> to vector<4x256xf32>
    %176 = arith.mulf %173, %175 : vector<4x256xf32>
    %177 = arith.addf %171, %176 : vector<4x256xf32>
    %178 = vector.extract_strided_slice %158 {offsets = [12, 0], sizes = [4, 256], strides = [1, 1]} : vector<36x256xf32> to vector<4x256xf32>
    %c5_i32 = arith.constant 5 : i32
    %179 = tpu.dynamic_rotate %178 by %c5_i32 dim 1 : vector<4x256xf32>, i32 -> vector<4x256xf32>
    %c21 = arith.constant 21 : index
    %c0_75 = arith.constant 0 : index
    %180 = vector.load %arg2[%c21, %c0_75] : memref<27x256xf32, #tpu.memory_space<vmem>>, vector<1x256xf32>
    %181 = vector.broadcast %180 : vector<1x256xf32> to vector<4x256xf32>
    %182 = arith.mulf %179, %181 : vector<4x256xf32>
    %183 = arith.addf %177, %182 : vector<4x256xf32>
    %184 = vector.extract_strided_slice %158 {offsets = [16, 0], sizes = [4, 256], strides = [1, 1]} : vector<36x256xf32> to vector<4x256xf32>
    %185 = arith.addf %183, %184 : vector<4x256xf32>
    %186 = vector.extract_strided_slice %158 {offsets = [20, 0], sizes = [4, 256], strides = [1, 1]} : vector<36x256xf32> to vector<4x256xf32>
    %c251_i32 = arith.constant 251 : i32
    %187 = tpu.dynamic_rotate %186 by %c251_i32 dim 1 : vector<4x256xf32>, i32 -> vector<4x256xf32>
    %c23 = arith.constant 23 : index
    %c0_76 = arith.constant 0 : index
    %188 = vector.load %arg2[%c23, %c0_76] : memref<27x256xf32, #tpu.memory_space<vmem>>, vector<1x256xf32>
    %189 = vector.broadcast %188 : vector<1x256xf32> to vector<4x256xf32>
    %190 = arith.mulf %187, %189 : vector<4x256xf32>
    %191 = arith.addf %185, %190 : vector<4x256xf32>
    %192 = vector.extract_strided_slice %158 {offsets = [24, 0], sizes = [4, 256], strides = [1, 1]} : vector<36x256xf32> to vector<4x256xf32>
    %c181_i32 = arith.constant 181 : i32
    %193 = tpu.dynamic_rotate %192 by %c181_i32 dim 1 : vector<4x256xf32>, i32 -> vector<4x256xf32>
    %c24 = arith.constant 24 : index
    %c0_77 = arith.constant 0 : index
    %194 = vector.load %arg2[%c24, %c0_77] : memref<27x256xf32, #tpu.memory_space<vmem>>, vector<1x256xf32>
    %195 = vector.broadcast %194 : vector<1x256xf32> to vector<4x256xf32>
    %196 = arith.mulf %193, %195 : vector<4x256xf32>
    %197 = arith.addf %191, %196 : vector<4x256xf32>
    %198 = vector.extract_strided_slice %158 {offsets = [28, 0], sizes = [4, 256], strides = [1, 1]} : vector<36x256xf32> to vector<4x256xf32>
    %c176_i32 = arith.constant 176 : i32
    %199 = tpu.dynamic_rotate %198 by %c176_i32 dim 1 : vector<4x256xf32>, i32 -> vector<4x256xf32>
    %c25 = arith.constant 25 : index
    %c0_78 = arith.constant 0 : index
    %200 = vector.load %arg2[%c25, %c0_78] : memref<27x256xf32, #tpu.memory_space<vmem>>, vector<1x256xf32>
    %201 = vector.broadcast %200 : vector<1x256xf32> to vector<4x256xf32>
    %202 = arith.mulf %199, %201 : vector<4x256xf32>
    %203 = arith.addf %197, %202 : vector<4x256xf32>
    %204 = vector.extract_strided_slice %158 {offsets = [32, 0], sizes = [4, 256], strides = [1, 1]} : vector<36x256xf32> to vector<4x256xf32>
    %c171_i32 = arith.constant 171 : i32
    %205 = tpu.dynamic_rotate %204 by %c171_i32 dim 1 : vector<4x256xf32>, i32 -> vector<4x256xf32>
    %c26 = arith.constant 26 : index
    %c0_79 = arith.constant 0 : index
    %206 = vector.load %arg2[%c26, %c0_79] : memref<27x256xf32, #tpu.memory_space<vmem>>, vector<1x256xf32>
    %207 = vector.broadcast %206 : vector<1x256xf32> to vector<4x256xf32>
    %208 = arith.mulf %205, %207 : vector<4x256xf32>
    %209 = arith.addf %203, %208 : vector<4x256xf32>
    %c0_80 = arith.constant 0 : index
    %c0_81 = arith.constant 0 : index
    %210 = vector.load %arg14[%c0_80, %c0_81] : memref<4x1xf32, #tpu.memory_space<vmem>>, vector<4x1xf32>
    %211 = vector.broadcast %210 : vector<4x1xf32> to vector<4x256xf32>
    %212 = arith.addf %209, %211 : vector<4x256xf32>
    %cst_82 = arith.constant 0.000000e+00 : f32
    %213 = vector.broadcast %cst_82 : f32 to vector<4x256xf32>
    %214 = arith.maximumf %212, %213 : vector<4x256xf32>
    %c0_83 = arith.constant 0 : index
    %c0_84 = arith.constant 0 : index
    %215 = vector.load %arg15[%c0_83, %c0_84] : memref<1x4xf32, #tpu.memory_space<vmem>>, vector<1x4xf32>
    %cst_85 = arith.constant dense<0.000000e+00> : vector<1x256xf32>
    %216 = tpu.matmul %215, %214, %cst_85 {dimension_numbers = #tpu.dot_dimension_numbers<[1], [0], [0], [1], [0, 0, 1, 1], [], []>} : vector<1x4xf32>, vector<4x256xf32>, vector<1x256xf32> -> vector<1x256xf32>
    %c0_86 = arith.constant 0 : index
    %c0_87 = arith.constant 0 : index
    %217 = vector.load %arg16[%c0_86, %c0_87] : memref<1x1xf32, #tpu.memory_space<vmem>>, vector<1x1xf32>
    %218 = vector.broadcast %217 : vector<1x1xf32> to vector<1x256xf32>
    %219 = arith.addf %216, %218 : vector<1x256xf32>
    %220 = vector.broadcast %25 : vector<64x1xf32> to vector<64x256xf32>
    %221 = vector.broadcast %219 : vector<1x256xf32> to vector<64x256xf32>
    %222 = arith.mulf %220, %221 : vector<64x256xf32>
    %cst_88 = arith.constant 0.000000e+00 : f32
    %223 = vector.broadcast %cst_88 : f32 to vector<64x256xf32>
    %224 = arith.subf %223, %222 : vector<64x256xf32>
    %225 = math.exp %224 : vector<64x256xf32>
    %cst_89 = arith.constant 1.000000e+00 : f32
    %226 = vector.broadcast %cst_89 : f32 to vector<64x256xf32>
    %227 = arith.addf %226, %225 : vector<64x256xf32>
    %cst_90 = arith.constant 1.000000e+00 : f32
    %228 = vector.broadcast %cst_90 : f32 to vector<64x256xf32>
    %229 = arith.divf %228, %227 : vector<64x256xf32>
    %cst_91 = arith.constant 1.000000e+00 : f32
    %230 = vector.broadcast %cst_91 : f32 to vector<64x256xf32>
    %231 = arith.addf %230, %229 : vector<64x256xf32>
    %232 = arith.mulf %231, %1 : vector<64x256xf32>
    %c0_92 = arith.constant 0 : index
    %c0_93 = arith.constant 0 : index
    %c0_94 = arith.constant 0 : index
    %233 = vector.load %arg17[%c0_92, %c0_93, %c0_94] : memref<1x64x256xf32, #tpu.memory_space<vmem>>, vector<1x64x256xf32>
    %234 = vector.shape_cast %233 : vector<1x64x256xf32> to vector<64x256xf32>
    %235 = vector.shape_cast %232 : vector<64x256xf32> to vector<1x64x256xf32>
    tpu.vector_store %arg17[%c0_92, %c0_93, %c0_94], %235 {strides = array<i32>} : memref<1x64x256xf32, #tpu.memory_space<vmem>>, vector<1x64x256xf32>,
    return
  }
  func.func @transform_0(%arg0: i32) -> (i32, i32, i32) {
    %c0_i32 = arith.constant 0 : i32
    %c0_i32_0 = arith.constant 0 : i32
    %c0_i32_1 = arith.constant 0 : i32
    return %arg0, %c0_i32, %c0_i32_0 : i32, i32, i32
  }
  func.func @transform_1(%arg0: i32) -> (i32, i32) {
    %c0_i32 = arith.constant 0 : i32
    %c0_i32_0 = arith.constant 0 : i32
    %c0_i32_1 = arith.constant 0 : i32
    return %c0_i32, %c0_i32_0 : i32, i32
  }
  func.func @transform_2(%arg0: i32) -> (i32, i32) {
    %c0_i32 = arith.constant 0 : i32
    %c0_i32_0 = arith.constant 0 : i32
    %c0_i32_1 = arith.constant 0 : i32
    return %c0_i32, %c0_i32_0 : i32, i32
  }
  func.func @transform_3(%arg0: i32) -> (i32, i32) {
    %c0_i32 = arith.constant 0 : i32
    %c0_i32_0 = arith.constant 0 : i32
    %c0_i32_1 = arith.constant 0 : i32
    return %c0_i32, %c0_i32_0 : i32, i32
  }
  func.func @transform_4(%arg0: i32) -> (i32, i32) {
    %c0_i32 = arith.constant 0 : i32
    %c0_i32_0 = arith.constant 0 : i32
    %c0_i32_1 = arith.constant 0 : i32
    return %c0_i32, %c0_i32_0 : i32, i32
  }
  func.func @transform_5(%arg0: i32) -> (i32, i32) {
    %c0_i32 = arith.constant 0 : i32
    %c0_i32_0 = arith.constant 0 : i32
    %c0_i32_1 = arith.constant 0 : i32
    return %c0_i32, %c0_i32_0 : i32, i32
  }
  func.func @transform_6(%arg0: i32) -> (i32, i32) {
    %c0_i32 = arith.constant 0 : i32
    %c0_i32_0 = arith.constant 0 : i32
    %c0_i32_1 = arith.constant 0 : i32
    return %c0_i32, %c0_i32_0 : i32, i32
  }
  func.func @transform_7(%arg0: i32) -> (i32, i32) {
    %c0_i32 = arith.constant 0 : i32
    %c0_i32_0 = arith.constant 0 : i32
    %c0_i32_1 = arith.constant 0 : i32
    return %c0_i32, %c0_i32_0 : i32, i32
  }
  func.func @transform_8(%arg0: i32) -> (i32, i32) {
    %c0_i32 = arith.constant 0 : i32
    %c0_i32_0 = arith.constant 0 : i32
    %c0_i32_1 = arith.constant 0 : i32
    return %c0_i32, %c0_i32_0 : i32, i32
  }
  func.func @transform_9(%arg0: i32) -> (i32, i32) {
    %c0_i32 = arith.constant 0 : i32
    %c0_i32_0 = arith.constant 0 : i32
    %c0_i32_1 = arith.constant 0 : i32
    return %c0_i32, %c0_i32_0 : i32, i32
  }
  func.func @transform_10(%arg0: i32) -> (i32, i32) {
    %c0_i32 = arith.constant 0 : i32
    %c0_i32_0 = arith.constant 0 : i32
    %c0_i32_1 = arith.constant 0 : i32
    return %c0_i32, %c0_i32_0 : i32, i32
  }
  func.func @transform_11(%arg0: i32) -> (i32, i32) {
    %c0_i32 = arith.constant 0 : i32
    %c0_i32_0 = arith.constant 0 : i32
    %c0_i32_1 = arith.constant 0 : i32
    return %c0_i32, %c0_i32_0 : i32, i32
  }
  func.func @transform_12(%arg0: i32) -> (i32, i32) {
    %c0_i32 = arith.constant 0 : i32
    %c0_i32_0 = arith.constant 0 : i32
    %c0_i32_1 = arith.constant 0 : i32
    return %c0_i32, %c0_i32_0 : i32, i32
  }
  func.func @transform_13(%arg0: i32) -> (i32, i32) {
    %c0_i32 = arith.constant 0 : i32
    %c0_i32_0 = arith.constant 0 : i32
    %c0_i32_1 = arith.constant 0 : i32
    return %c0_i32, %c0_i32_0 : i32, i32
  }
  func.func @transform_14(%arg0: i32) -> (i32, i32) {
    %c0_i32 = arith.constant 0 : i32
    %c0_i32_0 = arith.constant 0 : i32
    %c0_i32_1 = arith.constant 0 : i32
    return %c0_i32, %c0_i32_0 : i32, i32
  }
  func.func @transform_15(%arg0: i32) -> (i32, i32) {
    %c0_i32 = arith.constant 0 : i32
    %c0_i32_0 = arith.constant 0 : i32
    %c0_i32_1 = arith.constant 0 : i32
    return %c0_i32, %c0_i32_0 : i32, i32
  }
  func.func @transform_16(%arg0: i32) -> (i32, i32, i32) {
    %c0_i32 = arith.constant 0 : i32
    %c0_i32_0 = arith.constant 0 : i32
    %c0_i32_1 = arith.constant 0 : i32
    return %arg0, %c0_i32, %c0_i32_0 : i32, i32, i32
  }
}

</mosaic_0001>

<llo_original>
// kernel: sea_forward.1
$region0: #{sea_forward.1}
  #allocation0 [shape = 'u32[]', space=smem, size = 0x4, offset = 0x4, fixed_abs, tag = 'smem constant byte address 0x4 - core index']
  #allocation1 [shape = 'u32[72,128]{1,0:T(1,128)}', space=vmem, size = 0x9000, scoped, tag = 'internal scratch']
  #allocation2 [shape = 'f32[4,256]{1,0:T(4,128)}', space=vmem, size = 0x1000, scoped, tag = 'scratch operand']
  #allocation3 [shape = 'f32[64,2]{1,0:T(8,128)}', space=vmem, size = 0x8000, scoped, tag = 'scratch operand']
  #allocation4 [shape = 'f32[1,1]{1,0:T(1,128)S(1)}', space=vmem, size = 0x200, scoped, tag = 'scoped memory for sea_forward.1']
  %s0 = inlined_call_operand.vmem [shape: f32[2,64,256], index: 0, kind: input, shape index: {}]
  %s1 = inlined_call_operand.vmem [shape: f32[27,256], index: 1, kind: input, shape index: {}]
  %s2 = inlined_call_operand.vmem [shape: f32[4,64], index: 2, kind: input, shape index: {}]
  %s3 = inlined_call_operand.vmem [shape: f32[4,1], index: 3, kind: input, shape index: {}]
  %s4 = inlined_call_operand.vmem [shape: f32[64,4], index: 4, kind: input, shape index: {}]
  %s5 = inlined_call_operand.vmem [shape: f32[64,1], index: 5, kind: input, shape index: {}]
  %s6 = inlined_call_operand.vmem [shape: f32[2,64], index: 6, kind: input, shape index: {}]
  %s7 = inlined_call_operand.vmem [shape: f32[2,1], index: 7, kind: input, shape index: {}]
  %s8 = inlined_call_operand.vmem [shape: f32[36,4], index: 8, kind: input, shape index: {}]
  %s9 = inlined_call_operand.vmem [shape: f32[4,1], index: 9, kind: input, shape index: {}]
  %s10 = inlined_call_operand.vmem [shape: f32[36,4], index: 10, kind: input, shape index: {}]
  %s11 = inlined_call_operand.vmem [shape: f32[4,1], index: 11, kind: input, shape index: {}]
  %s12 = inlined_call_operand.vmem [shape: f32[36,4], index: 12, kind: input, shape index: {}]
  %s13 = inlined_call_operand.vmem [shape: f32[4,1], index: 13, kind: input, shape index: {}]
  %s14 = inlined_call_operand.vmem [shape: f32[1,4], index: 14, kind: input, shape index: {}]
  %s15 = inlined_call_operand.<no memory space> [shape: f32[1,1], index: 15, kind: input, shape index: {}]
  %s16 = inlined_call_operand.vmem [shape: f32[2,64,256], index: 16, kind: output, shape index: {}]
  %s17 = sld [smem:[#allocation0]]
  $region97: #{sea_forward.1} parent=0
    _
  %s19 = ssub.s32 1, %s17
  %s20 = scalar_select 0, %s19, %s17
  %v21 = vstv %s15
  %22 = vst [vmem:[#allocation4] sm:$0x1] %v21
  loop: start=0, step=1, limit=4
  $region2: #{sea_forward.1} parent=0 // loop_pre_header
    _
  $region3: #{sea_forward.1} parent=0 // loop_header
    %s24 = sphi 0, %s28
    %p25 = scmp.ge.s32.totalorder %s24, 4
    %s34 = sphi 0, %s36
    %s37 = sphi 0, %s34
    %s38 = sphi 0, %s37
    %s54 = sphi 0, %s38
    %s58 = sphi 0, %s58
    %s60 = sphi 0, %s58
    %s61 = sphi 0, %s60
    %s75 = sphi 0, %s61
    %s79 = sphi 0, %s79
    %s81 = sphi 0, %s79
    %s82 = sphi 0, %s81
    %s96 = sphi 0, %s82
    %s100 = sphi 0, %s100
    %s102 = sphi 0, %s100
    %s103 = sphi 0, %s102
    %s117 = sphi 0, %s103
    %s121 = sphi 0, %s121
    %s123 = sphi 0, %s121
    %s124 = sphi 0, %s123
    %s138 = sphi 0, %s124
    %s142 = sphi 0, %s142
    %s144 = sphi 0, %s142
    %s145 = sphi 0, %s144
    %s159 = sphi 0, %s145
    %s163 = sphi 0, %s163
    %s165 = sphi 0, %s163
    %s166 = sphi 0, %s165
    %s180 = sphi 0, %s166
    %s184 = sphi 0, %s184
    %s186 = sphi 0, %s184
    %s187 = sphi 0, %s186
    %s201 = sphi 0, %s187
    %s205 = sphi 0, %s205
    %s207 = sphi 0, %s205
    %s208 = sphi 0, %s207
    %s222 = sphi 0, %s208
    %s226 = sphi 0, %s226
    %s228 = sphi 0, %s226
    %s229 = sphi 0, %s228
    %s243 = sphi 0, %s229
    %s247 = sphi 0, %s247
    %s249 = sphi 0, %s247
    %s250 = sphi 0, %s249
    %s264 = sphi 0, %s250
    %s268 = sphi 0, %s268
    %s270 = sphi 0, %s268
    %s271 = sphi 0, %s270
    %s285 = sphi 0, %s271
    %s289 = sphi 0, %s289
    %s291 = sphi 0, %s289
    %s292 = sphi 0, %s291
    %s306 = sphi 0, %s292
    %s310 = sphi 0, %s310
    %s312 = sphi 0, %s310
    %s313 = sphi 0, %s312
    %s327 = sphi 0, %s313
    %s331 = sphi 0, %s331
    %s333 = sphi 0, %s331
    %s334 = sphi 0, %s333
    %s348 = sphi 0, %s334
    %s352 = sphi 0, %s352
    %s354 = sphi 0, %s352
    %s355 = sphi 0, %s354
    %s369 = sphi 0, %s355
    %s375 = sphi 0, %s377
    %s378 = sphi 0, %s375
    %s379 = sphi 0, %s378
    %s395 = sphi 0, %s379
  $region4: #{sea_forward.1} parent=0 // loop_header_branch
    %27 = sbr.rel (%p25) target = $region8
  $region5: #{sea_forward.1} parent=0 // loop_body
    %s29 = ssub.s32 %s24, 1
    %s30 = ssub.s32 %s24, 2
    %s31 = sadd.s32 %s24, 1
    %s32 = ssub.s32 %s24, %s31
    %p33 = scmp.eq.s32.totalorder %s32, 0
    %s35 = sadd.s32 %s34, 1
    %s36 = scalar_select %p33, %s34, %s35
    %p39 = pneg %p33
    %p40 = scmp.eq.s32.totalorder %s24, 1
    %p41 = por %p39, %p40
    %p42 = scmp.ne.s32.totalorder %s34, %s37
    %p43 = scmp.eq.s32.totalorder %s24, 0
    %p44 = por %p42, %p43
    %p45 = scmp.ne.s32.totalorder %s34, %s37
    %p46 = scmp.eq.s32.totalorder %s29, 1
    %p47 = por %p45, %p46
    %p48 = scmp.ne.s32.totalorder %s37, %s38
    %p49 = scmp.eq.s32.totalorder %s29, 0
    %p50 = por %p48, %p49
    %p51 = scmp.ne.s32.totalorder %s37, %s38
    %p52 = scmp.eq.s32.totalorder %s30, 1
    %p53 = por %p51, %p52
    %p55 = scmp.ne.s32.totalorder %s38, %s54
    %p56 = scmp.eq.s32.totalorder %s30, 0
    %p57 = por %p55, %p56
    %s59 = sadd.s32 %s58, 1
    %p62 = scmp.eq.s32.totalorder %s24, 1
    %p63 = scmp.ne.s32.totalorder %s58, %s60
    %p64 = scmp.eq.s32.totalorder %s24, 0
    %p65 = por %p63, %p64
    %p66 = scmp.ne.s32.totalorder %s58, %s60
    %p67 = scmp.eq.s32.totalorder %s29, 1
    %p68 = por %p66, %p67
    %p69 = scmp.ne.s32.totalorder %s60, %s61
    %p70 = scmp.eq.s32.totalorder %s29, 0
    %p71 = por %p69, %p70
    %p72 = scmp.ne.s32.totalorder %s60, %s61
    %p73 = scmp.eq.s32.totalorder %s30, 1
    %p74 = por %p72, %p73
    %p76 = scmp.ne.s32.totalorder %s61, %s75
    %p77 = scmp.eq.s32.totalorder %s30, 0
    %p78 = por %p76, %p77
    %s80 = sadd.s32 %s79, 1
    %p83 = scmp.eq.s32.totalorder %s24, 1
    %p84 = scmp.ne.s32.totalorder %s79, %s81
    %p85 = scmp.eq.s32.totalorder %s24, 0
    %p86 = por %p84, %p85
    %p87 = scmp.ne.s32.totalorder %s79, %s81
    %p88 = scmp.eq.s32.totalorder %s29, 1
    %p89 = por %p87, %p88
    %p90 = scmp.ne.s32.totalorder %s81, %s82
    %p91 = scmp.eq.s32.totalorder %s29, 0
    %p92 = por %p90, %p91
    %p93 = scmp.ne.s32.totalorder %s81, %s82
    %p94 = scmp.eq.s32.totalorder %s30, 1
    %p95 = por %p93, %p94
    %p97 = scmp.ne.s32.totalorder %s82, %s96
    %p98 = scmp.eq.s32.totalorder %s30, 0
    %p99 = por %p97, %p98
    %s101 = sadd.s32 %s100, 1
    %p104 = scmp.eq.s32.totalorder %s24, 1
    %p105 = scmp.ne.s32.totalorder %s100, %s102
    %p106 = scmp.eq.s32.totalorder %s24, 0
    %p107 = por %p105, %p106
    %p108 = scmp.ne.s32.totalorder %s100, %s102
    %p109 = scmp.eq.s32.totalorder %s29, 1
    %p110 = por %p108, %p109
    %p111 = scmp.ne.s32.totalorder %s102, %s103
    %p112 = scmp.eq.s32.totalorder %s29, 0
    %p113 = por %p111, %p112
    %p114 = scmp.ne.s32.totalorder %s102, %s103
    %p115 = scmp.eq.s32.totalorder %s30, 1
    %p116 = por %p114, %p115
    %p118 = scmp.ne.s32.totalorder %s103, %s117
    %p119 = scmp.eq.s32.totalorder %s30, 0
    %p120 = por %p118, %p119
    %s122 = sadd.s32 %s121, 1
    %p125 = scmp.eq.s32.totalorder %s24, 1
    %p126 = scmp.ne.s32.totalorder %s121, %s123
    %p127 = scmp.eq.s32.totalorder %s24, 0
    %p128 = por %p126, %p127
    %p129 = scmp.ne.s32.totalorder %s121, %s123
    %p130 = scmp.eq.s32.totalorder %s29, 1
    %p131 = por %p129, %p130
    %p132 = scmp.ne.s32.totalorder %s123, %s124
    %p133 = scmp.eq.s32.totalorder %s29, 0
    %p134 = por %p132, %p133
    %p135 = scmp.ne.s32.totalorder %s123, %s124
    %p136 = scmp.eq.s32.totalorder %s30, 1
    %p137 = por %p135, %p136
    %p139 = scmp.ne.s32.totalorder %s124, %s138
    %p140 = scmp.eq.s32.totalorder %s30, 0
    %p141 = por %p139, %p140
    %s143 = sadd.s32 %s142, 1
    %p146 = scmp.eq.s32.totalorder %s24, 1
    %p147 = scmp.ne.s32.totalorder %s142, %s144
    %p148 = scmp.eq.s32.totalorder %s24, 0
    %p149 = por %p147, %p148
    %p150 = scmp.ne.s32.totalorder %s142, %s144
    %p151 = scmp.eq.s32.totalorder %s29, 1
    %p152 = por %p150, %p151
    %p153 = scmp.ne.s32.totalorder %s144, %s145
    %p154 = scmp.eq.s32.totalorder %s29, 0
    %p155 = por %p153, %p154
    %p156 = scmp.ne.s32.totalorder %s144, %s145
    %p157 = scmp.eq.s32.totalorder %s30, 1
    %p158 = por %p156, %p157
    %p160 = scmp.ne.s32.totalorder %s145, %s159
    %p161 = scmp.eq.s32.totalorder %s30, 0
    %p162 = por %p160, %p161
    %s164 = sadd.s32 %s163, 1
    %p167 = scmp.eq.s32.totalorder %s24, 1
    %p168 = scmp.ne.s32.totalorder %s163, %s165
    %p169 = scmp.eq.s32.totalorder %s24, 0
    %p170 = por %p168, %p169
    %p171 = scmp.ne.s32.totalorder %s163, %s165
    %p172 = scmp.eq.s32.totalorder %s29, 1
    %p173 = por %p171, %p172
    %p174 = scmp.ne.s32.totalorder %s165, %s166
    %p175 = scmp.eq.s32.totalorder %s29, 0
    %p176 = por %p174, %p175
    %p177 = scmp.ne.s32.totalorder %s165, %s166
    %p178 = scmp.eq.s32.totalorder %s30, 1
    %p179 = por %p177, %p178
    %p181 = scmp.ne.s32.totalorder %s166, %s180
    %p182 = scmp.eq.s32.totalorder %s30, 0
    %p183 = por %p181, %p182
    %s185 = sadd.s32 %s184, 1
    %p188 = scmp.eq.s32.totalorder %s24, 1
    %p189 = scmp.ne.s32.totalorder %s184, %s186
    %p190 = scmp.eq.s32.totalorder %s24, 0
    %p191 = por %p189, %p190
    %p192 = scmp.ne.s32.totalorder %s184, %s186
    %p193 = scmp.eq.s32.totalorder %s29, 1
    %p194 = por %p192, %p193
    %p195 = scmp.ne.s32.totalorder %s186, %s187
    %p196 = scmp.eq.s32.totalorder %s29, 0
    %p197 = por %p195, %p196
    %p198 = scmp.ne.s32.totalorder %s186, %s187
    %p199 = scmp.eq.s32.totalorder %s30, 1
    %p200 = por %p198, %p199
    %p202 = scmp.ne.s32.totalorder %s187, %s201
    %p203 = scmp.eq.s32.totalorder %s30, 0
    %p204 = por %p202, %p203
    %s206 = sadd.s32 %s205, 1
    %p209 = scmp.eq.s32.totalorder %s24, 1
    %p210 = scmp.ne.s32.totalorder %s205, %s207
    %p211 = scmp.eq.s32.totalorder %s24, 0
    %p212 = por %p210, %p211
    %p213 = scmp.ne.s32.totalorder %s205, %s207
    %p214 = scmp.eq.s32.totalorder %s29, 1
    %p215 = por %p213, %p214
    %p216 = scmp.ne.s32.totalorder %s207, %s208
    %p217 = scmp.eq.s32.totalorder %s29, 0
    %p218 = por %p216, %p217
    %p219 = scmp.ne.s32.totalorder %s207, %s208
    %p220 = scmp.eq.s32.totalorder %s30, 1
    %p221 = por %p219, %p220
    %p223 = scmp.ne.s32.totalorder %s208, %s222
    %p224 = scmp.eq.s32.totalorder %s30, 0
    %p225 = por %p223, %p224
    %s227 = sadd.s32 %s226, 1
    %p230 = scmp.eq.s32.totalorder %s24, 1
    %p231 = scmp.ne.s32.totalorder %s226, %s228
    %p232 = scmp.eq.s32.totalorder %s24, 0
    %p233 = por %p231, %p232
    %p234 = scmp.ne.s32.totalorder %s226, %s228
    %p235 = scmp.eq.s32.totalorder %s29, 1
    %p236 = por %p234, %p235
    %p237 = scmp.ne.s32.totalorder %s228, %s229
    %p238 = scmp.eq.s32.totalorder %s29, 0
    %p239 = por %p237, %p238
    %p240 = scmp.ne.s32.totalorder %s228, %s229
    %p241 = scmp.eq.s32.totalorder %s30, 1
    %p242 = por %p240, %p241
    %p244 = scmp.ne.s32.totalorder %s229, %s243
    %p245 = scmp.eq.s32.totalorder %s30, 0
    %p246 = por %p244, %p245
    %s248 = sadd.s32 %s247, 1
    %p251 = scmp.eq.s32.totalorder %s24, 1
    %p252 = scmp.ne.s32.totalorder %s247, %s249
    %p253 = scmp.eq.s32.totalorder %s24, 0
    %p254 = por %p252, %p253
    %p255 = scmp.ne.s32.totalorder %s247, %s249
    %p256 = scmp.eq.s32.totalorder %s29, 1
    %p257 = por %p255, %p256
    %p258 = scmp.ne.s32.totalorder %s249, %s250
    %p259 = scmp.eq.s32.totalorder %s29, 0
    %p260 = por %p258, %p259
    %p261 = scmp.ne.s32.totalorder %s249, %s250
    %p262 = scmp.eq.s32.totalorder %s30, 1
    %p263 = por %p261, %p262
    %p265 = scmp.ne.s32.totalorder %s250, %s264
    %p266 = scmp.eq.s32.totalorder %s30, 0
    %p267 = por %p265, %p266
    %s269 = sadd.s32 %s268, 1
    %p272 = scmp.eq.s32.totalorder %s24, 1
    %p273 = scmp.ne.s32.totalorder %s268, %s270
    %p274 = scmp.eq.s32.totalorder %s24, 0
    %p275 = por %p273, %p274
    %p276 = scmp.ne.s32.totalorder %s268, %s270
    %p277 = scmp.eq.s32.totalorder %s29, 1
    %p278 = por %p276, %p277
    %p279 = scmp.ne.s32.totalorder %s270, %s271
    %p280 = scmp.eq.s32.totalorder %s29, 0
    %p281 = por %p279, %p280
    %p282 = scmp.ne.s32.totalorder %s270, %s271
    %p283 = scmp.eq.s32.totalorder %s30, 1
    %p284 = por %p282, %p283
    %p286 = scmp.ne.s32.totalorder %s271, %s285
    %p287 = scmp.eq.s32.totalorder %s30, 0
    %p288 = por %p286, %p287
    %s290 = sadd.s32 %s289, 1
    %p293 = scmp.eq.s32.totalorder %s24, 1
    %p294 = scmp.ne.s32.totalorder %s289, %s291
    %p295 = scmp.eq.s32.totalorder %s24, 0
    %p296 = por %p294, %p295
    %p297 = scmp.ne.s32.totalorder %s289, %s291
    %p298 = scmp.eq.s32.totalorder %s29, 1
    %p299 = por %p297, %p298
    %p300 = scmp.ne.s32.totalorder %s291, %s292
    %p301 = scmp.eq.s32.totalorder %s29, 0
    %p302 = por %p300, %p301
    %p303 = scmp.ne.s32.totalorder %s291, %s292
    %p304 = scmp.eq.s32.totalorder %s30, 1
    %p305 = por %p303, %p304
    %p307 = scmp.ne.s32.totalorder %s292, %s306
    %p308 = scmp.eq.s32.totalorder %s30, 0
    %p309 = por %p307, %p308
    %s311 = sadd.s32 %s310, 1
    %p314 = scmp.eq.s32.totalorder %s24, 1
    %p315 = scmp.ne.s32.totalorder %s310, %s312
    %p316 = scmp.eq.s32.totalorder %s24, 0
    %p317 = por %p315, %p316
    %p318 = scmp.ne.s32.totalorder %s310, %s312
    %p319 = scmp.eq.s32.totalorder %s29, 1
    %p320 = por %p318, %p319
    %p321 = scmp.ne.s32.totalorder %s312, %s313
    %p322 = scmp.eq.s32.totalorder %s29, 0
    %p323 = por %p321, %p322
    %p324 = scmp.ne.s32.totalorder %s312, %s313
    %p325 = scmp.eq.s32.totalorder %s30, 1
    %p326 = por %p324, %p325
    %p328 = scmp.ne.s32.totalorder %s313, %s327
    %p329 = scmp.eq.s32.totalorder %s30, 0
    %p330 = por %p328, %p329
    %s332 = sadd.s32 %s331, 1
    %p335 = scmp.eq.s32.totalorder %s24, 1
    %p336 = scmp.ne.s32.totalorder %s331, %s333
    %p337 = scmp.eq.s32.totalorder %s24, 0
    %p338 = por %p336, %p337
    %p339 = scmp.ne.s32.totalorder %s331, %s333
    %p340 = scmp.eq.s32.totalorder %s29, 1
    %p341 = por %p339, %p340
    %p342 = scmp.ne.s32.totalorder %s333, %s334
    %p343 = scmp.eq.s32.totalorder %s29, 0
    %p344 = por %p342, %p343
    %p345 = scmp.ne.s32.totalorder %s333, %s334
    %p346 = scmp.eq.s32.totalorder %s30, 1
    %p347 = por %p345, %p346
    %p349 = scmp.ne.s32.totalorder %s334, %s348
    %p350 = scmp.eq.s32.totalorder %s30, 0
    %p351 = por %p349, %p350
    %s353 = sadd.s32 %s352, 1
    %p356 = scmp.eq.s32.totalorder %s24, 1
    %p357 = scmp.ne.s32.totalorder %s352, %s354
    %p358 = scmp.eq.s32.totalorder %s24, 0
    %p359 = por %p357, %p358
    %p360 = scmp.ne.s32.totalorder %s352, %s354
    %p361 = scmp.eq.s32.totalorder %s29, 1
    %p362 = por %p360, %p361
    %p363 = scmp.ne.s32.totalorder %s354, %s355
    %p364 = scmp.eq.s32.totalorder %s29, 0
    %p365 = por %p363, %p364
    %p366 = scmp.ne.s32.totalorder %s354, %s355
    %p367 = scmp.eq.s32.totalorder %s30, 1
    %p368 = por %p366, %p367
    %p370 = scmp.ne.s32.totalorder %s355, %s369
    %p371 = scmp.eq.s32.totalorder %s30, 0
    %p372 = por %p370, %p371
    %s373 = ssub.s32 %s24, %s31
    %p374 = scmp.eq.s32.totalorder %s373, 0
    %s376 = sadd.s32 %s375, 1
    %s377 = scalar_select %p374, %s375, %s376
    %p380 = pneg %p374
    %p381 = scmp.eq.s32.totalorder %s24, 1
    %p382 = por %p380, %p381
    %p383 = scmp.ne.s32.totalorder %s375, %s378
    %p384 = scmp.eq.s32.totalorder %s24, 0
    %p385 = por %p383, %p384
    %p386 = scmp.ne.s32.totalorder %s375, %s378
    %p387 = scmp.eq.s32.totalorder %s29, 1
    %p388 = por %p386, %p387
    %p389 = scmp.ne.s32.totalorder %s378, %s379
    %p390 = scmp.eq.s32.totalorder %s29, 0
    %p391 = por %p389, %p390
    %p392 = scmp.ne.s32.totalorder %s378, %s379
    %p393 = scmp.eq.s32.totalorder %s30, 1
    %p394 = por %p392, %p393
    %p396 = scmp.ne.s32.totalorder %s379, %s395
    %p397 = scmp.eq.s32.totalorder %s30, 0
    %p398 = por %p396, %p397
    %p399 = scmp.le.s32.totalorder 1, %s24
    %p400 = scmp.lt.s32.totalorder %s24, 3
    %p401 = pnand %p399, %p400
    %p402 = pneg %p401
    // Predicated region
    $region9: #{sea_forward.1} parent=5 // pred_check
      _
    $region10: #{sea_forward.1} parent=5 // pred_check_branch
      %404 = sbr.rel (%p401) target = $region12
    $region11: #{sea_forward.1} parent=5 // pred_region
      %s405 = ssub.s32 %s24, 1
      // Predicated region
      $region13: #{sea_forward.1} parent=11 // pred_check
        %p406 = pneg %p71
      $region14: #{sea_forward.1} parent=11 // pred_check_branch
        %408 = sbr.rel (%p406) target = $region16
      $region15: #{sea_forward.1} parent=11 // pred_region
        _
      $region16: #{sea_forward.1} parent=11 // pred_fallthru
        _
      // Predicated region
      $region17: #{sea_forward.1} parent=11 // pred_check
        %p409 = pneg %p92
      $region18: #{sea_forward.1} parent=11 // pred_check_branch
        %411 = sbr.rel (%p409) target = $region20
      $region19: #{sea_forward.1} parent=11 // pred_region
        _
      $region20: #{sea_forward.1} parent=11 // pred_fallthru
        _
      // Predicated region
      $region21: #{sea_forward.1} parent=11 // pred_check
        %p412 = pneg %p113
      $region22: #{sea_forward.1} parent=11 // pred_check_branch
        %414 = sbr.rel (%p412) target = $region24
      $region23: #{sea_forward.1} parent=11 // pred_region
        _
      $region24: #{sea_forward.1} parent=11 // pred_fallthru
        _
      // Predicated region
      $region25: #{sea_forward.1} parent=11 // pred_check
        %p415 = pneg %p134
      $region26: #{sea_forward.1} parent=11 // pred_check_branch
        %417 = sbr.rel (%p415) target = $region28
      $region27: #{sea_forward.1} parent=11 // pred_region
        _
      $region28: #{sea_forward.1} parent=11 // pred_fallthru
        _
      // Predicated region
      $region29: #{sea_forward.1} parent=11 // pred_check
        %p418 = pneg %p155
      $region30: #{sea_forward.1} parent=11 // pred_check_branch
        %420 = sbr.rel (%p418) target = $region32
      $region31: #{sea_forward.1} parent=11 // pred_region
        _
      $region32: #{sea_forward.1} parent=11 // pred_fallthru
        _
      // Predicated region
      $region33: #{sea_forward.1} parent=11 // pred_check
        %p421 = pneg %p176
      $region34: #{sea_forward.1} parent=11 // pred_check_branch
        %423 = sbr.rel (%p421) target = $region36
      $region35: #{sea_forward.1} parent=11 // pred_region
        _
      $region36: #{sea_forward.1} parent=11 // pred_fallthru
        _
      // Predicated region
      $region37: #{sea_forward.1} parent=11 // pred_check
        %p424 = pneg %p197
      $region38: #{sea_forward.1} parent=11 // pred_check_branch
        %426 = sbr.rel (%p424) target = $region40
      $region39: #{sea_forward.1} parent=11 // pred_region
        _
      $region40: #{sea_forward.1} parent=11 // pred_fallthru
        _
      // Predicated region
      $region41: #{sea_forward.1} parent=11 // pred_check
        %p427 = pneg %p218
      $region42: #{sea_forward.1} parent=11 // pred_check_branch
        %429 = sbr.rel (%p427) target = $region44
      $region43: #{sea_forward.1} parent=11 // pred_region
        _
      $region44: #{sea_forward.1} parent=11 // pred_fallthru
        _
      // Predicated region
      $region45: #{sea_forward.1} parent=11 // pred_check
        %p430 = pneg %p239
      $region46: #{sea_forward.1} parent=11 // pred_check_branch
        %432 = sbr.rel (%p430) target = $region48
      $region47: #{sea_forward.1} parent=11 // pred_region
        _
      $region48: #{sea_forward.1} parent=11 // pred_fallthru
        _
      // Predicated region
      $region49: #{sea_forward.1} parent=11 // pred_check
        %p433 = pneg %p260
      $region50: #{sea_forward.1} parent=11 // pred_check_branch
        %435 = sbr.rel (%p433) target = $region52
      $region51: #{sea_forward.1} parent=11 // pred_region
        _
      $region52: #{sea_forward.1} parent=11 // pred_fallthru
        _
      // Predicated region
      $region53: #{sea_forward.1} parent=11 // pred_check
        %p436 = pneg %p281
      $region54: #{sea_forward.1} parent=11 // pred_check_branch
        %438 = sbr.rel (%p436) target = $region56
      $region55: #{sea_forward.1} parent=11 // pred_region
        _
      $region56: #{sea_forward.1} parent=11 // pred_fallthru
        _
      // Predicated region
      $region57: #{sea_forward.1} parent=11 // pred_check
        %p439 = pneg %p302
      $region58: #{sea_forward.1} parent=11 // pred_check_branch
        %441 = sbr.rel (%p439) target = $region60
      $region59: #{sea_forward.1} parent=11 // pred_region
        _
      $region60: #{sea_forward.1} parent=11 // pred_fallthru
        _
      // Predicated region
      $region61: #{sea_forward.1} parent=11 // pred_check
        %p442 = pneg %p323
      $region62: #{sea_forward.1} parent=11 // pred_check_branch
        %444 = sbr.rel (%p442) target = $region64
      $region63: #{sea_forward.1} parent=11 // pred_region
        _
      $region64: #{sea_forward.1} parent=11 // pred_fallthru
        _
      // Predicated region
      $region65: #{sea_forward.1} parent=11 // pred_check
        %p445 = pneg %p344
      $region66: #{sea_forward.1} parent=11 // pred_check_branch
        %447 = sbr.rel (%p445) target = $region68
      $region67: #{sea_forward.1} parent=11 // pred_region
        _
      $region68: #{sea_forward.1} parent=11 // pred_fallthru
        _
      // Predicated region
      $region69: #{sea_forward.1} parent=11 // pred_check
        %p448 = pneg %p365
      $region70: #{sea_forward.1} parent=11 // pred_check_branch
        %450 = sbr.rel (%p448) target = $region72
      $region71: #{sea_forward.1} parent=11 // pred_region
        _
      $region72: #{sea_forward.1} parent=11 // pred_fallthru
        _
    $region12: #{sea_forward.1} parent=5 // pred_fallthru
      _
    %p451 = scmp.lt.s32.totalorder %s24, 2
    // Predicated region
    $region73: #{sea_forward.1} parent=5 // pred_check
      %p452 = pneg %p451
    $region74: #{sea_forward.1} parent=5 // pred_check_branch
      %454 = sbr.rel (%p452) target = $region76
    $region75: #{sea_forward.1} parent=5 // pred_region
      // Predicated region
      $region77: #{sea_forward.1} parent=75 // pred_check
        %p455 = pneg %p44
      $region78: #{sea_forward.1} parent=75 // pred_check_branch
        %457 = sbr.rel (%p455) target = $region80
      $region79: #{sea_forward.1} parent=75 // pred_region
        %p458 = scmp.lt.s32.totalorder %s24, 1
        %s459 = scalar_select %p458, %s24, 1
        %s460 = smul.addr %s459, 16
        %s461 = smul.addr %s460, 8
        %s462 = scalar_lea.vmem %s0, %s461
      $region80: #{sea_forward.1} parent=75 // pred_fallthru
        _
    $region76: #{sea_forward.1} parent=5 // pred_fallthru
      _
    %p463 = scmp.le.s32.totalorder 1, %s24
    %p464 = scmp.lt.s32.totalorder %s24, 3
    %p465 = pnand %p463, %p464
    %p466 = pneg %p465
    // Predicated region
    $region81: #{sea_forward.1} parent=5 // pred_check
      _
    $region82: #{sea_forward.1} parent=5 // pred_check_branch
      %468 = sbr.rel (%p465) target = $region84
    $region83: #{sea_forward.1} parent=5 // pred_region
      %s469 = ssub.s32 %s24, 1
      %p470 = scmp.lt.s32.totalorder %s29, 1
      %s471 = scalar_select %p470, %s29, 1
      %s472 = smul.addr %s471, 16
      %s473 = smul.addr %s472, 8
      %s474 = scalar_lea.vmem %s0, %s473
      %p475 = pneg %p50
      %p476 = pneg %p47
      %p477 = pneg %p71
      %p478 = pneg %p68
      %p479 = pneg %p92
      %p480 = pneg %p89
      %p481 = pneg %p113
      %p482 = pneg %p110
      %p483 = pneg %p134
      %p484 = pneg %p131
      %p485 = pneg %p155
      %p486 = pneg %p152
      %p487 = pneg %p176
      %p488 = pneg %p173
      %p489 = pneg %p197
      %p490 = pneg %p194
      %p491 = pneg %p218
      %p492 = pneg %p215
      %p493 = pneg %p239
      %p494 = pneg %p236
      %p495 = pneg %p260
      %p496 = pneg %p257
      %p497 = pneg %p281
      %p498 = pneg %p278
      %p499 = pneg %p302
      %p500 = pneg %p299
      %p501 = pneg %p323
      %p502 = pneg %p320
      %p503 = pneg %p344
      %p504 = pneg %p341
      %p505 = pneg %p365
      %p506 = pneg %p362
      %p507 = pneg %p391
      %p508 = pneg %p388
      %p509 = scmp.lt.s32.totalorder %s29, 1
      %s510 = scalar_select %p509, %s29, 1
      %s511 = smul.addr %s510, 16
      %s512 = smul.addr %s511, 8
      %s513 = scalar_lea.vmem %s16, %s512
      %p514 = scmp.lt.s32.totalorder %s29, 1
      %s515 = scalar_select %p514, %s29, 1
      %s516 = smul.addr %s515, 16
      %s517 = smul.addr %s516, 8
      %s518 = scalar_lea.vmem %s0, %s517
      %p519 = scmp.lt.s32.totalorder %s29, 1
      %s520 = scalar_select %p519, %s29, 1
      %s521 = smul.addr %s520, 16
      %s522 = smul.addr %s521, 8
      %s523 = scalar_lea.vmem %s16, %s522
      %v524 = vld [vmem:[%s518] sm:$0xff]
      %v525 = vld [vmem:[%s518 + $0x8] sm:$0xff]
      %v526 = vld [vmem:[%s518 + $0x10] sm:$0xff]
      %v527 = vld [vmem:[%s518 + $0x18] sm:$0xff]
      %v528 = vld [vmem:[%s518 + $0x20] sm:$0xff]
      %v529 = vld [vmem:[%s518 + $0x28] sm:$0xff]
      %v530 = vld [vmem:[%s518 + $0x30] sm:$0xff]
      %v531 = vld [vmem:[%s518 + $0x38] sm:$0xff]
      %v532 = vld [vmem:[%s518 + $0x40] sm:$0xff]
      %v533 = vld [vmem:[%s518 + $0x48] sm:$0xff]
      %v534 = vld [vmem:[%s518 + $0x50] sm:$0xff]
      %v535 = vld [vmem:[%s518 + $0x58] sm:$0xff]
      %v536 = vld [vmem:[%s518 + $0x60] sm:$0xff]
      %v537 = vld [vmem:[%s518 + $0x68] sm:$0xff]
      %v538 = vld [vmem:[%s518 + $0x70] sm:$0xff]
      %v539 = vld [vmem:[%s518 + $0x78] sm:$0xff]
      %v540 = vadd.f32 %v524, %v525
      %541 = vadd.xlane.f32.xlu0 %v540
      %v542 = vpop.xlane.xlu0 %541
      %v543 = vadd.f32 %v526, %v527
      %544 = vadd.xlane.f32.xlu0 %v543
      %v545 = vpop.xlane.xlu0 %544
      %v546 = vadd.f32 %v528, %v529
      %547 = vadd.xlane.f32.xlu0 %v546
      %v548 = vpop.xlane.xlu0 %547
      %v549 = vadd.f32 %v530, %v531
      %550 = vadd.xlane.f32.xlu0 %v549
      %v551 = vpop.xlane.xlu0 %550
      %v552 = vadd.f32 %v532, %v533
      %553 = vadd.xlane.f32.xlu0 %v552
      %v554 = vpop.xlane.xlu0 %553
      %v555 = vadd.f32 %v534, %v535
      %556 = vadd.xlane.f32.xlu0 %v555
      %v557 = vpop.xlane.xlu0 %556
      %v558 = vadd.f32 %v536, %v537
      %559 = vadd.xlane.f32.xlu0 %v558
      %v560 = vpop.xlane.xlu0 %559
      %v561 = vadd.f32 %v538, %v539
      %562 = vadd.xlane.f32.xlu0 %v561
      %v563 = vpop.xlane.xlu0 %562
      %v564 = vrcp.pop 256.0
      %v565 = vmul.f32 256.0, %v564
      %v566 = vsub.f32 1.0, %v565
      %v567 = vmul.f32 %v564, %v566
      %v568 = vadd.f32 %v564, %v567
      %vm569 = vweird.f32 %v564
      %v570 = vsel %vm569, %v564, %v568
      %v571 = vmul.f32 %v542, %v570
      %v572 = vmul.f32 %v545, %v570
      %v573 = vmul.f32 %v548, %v570
      %v574 = vmul.f32 %v551, %v570
      %v575 = vmul.f32 %v554, %v570
      %v576 = vmul.f32 %v557, %v570
      %v577 = vmul.f32 %v560, %v570
      %v578 = vmul.f32 %v563, %v570
      %vm579 = vcmask 7168
      %580 = vst.msk [vmem:[#allocation3] sm:$0xff] %vm579, %v571
      %581 = vst.msk [vmem:[#allocation3 + $0x8] sm:$0xff] %vm579, %v572
      %582 = vst.msk [vmem:[#allocation3 + $0x10] sm:$0xff] %vm579, %v573
      %583 = vst.msk [vmem:[#allocation3 + $0x18] sm:$0xff] %vm579, %v574
      %584 = vst.msk [vmem:[#allocation3 + $0x20] sm:$0xff] %vm579, %v575
      %585 = vst.msk [vmem:[#allocation3 + $0x28] sm:$0xff] %vm579, %v576
      %586 = vst.msk [vmem:[#allocation3 + $0x30] sm:$0xff] %vm579, %v577
      %587 = vst.msk [vmem:[#allocation3 + $0x38] sm:$0xff] %vm579, %v578
      %v588 = vmax.f32 %v524, %v525
      %589 = vmax.xlane.f32.xlu0 %v588
      %v590 = vpop.xlane.xlu0 %589
      %v591 = vmax.f32 %v526, %v527
      %592 = vmax.xlane.f32.xlu0 %v591
      %v593 = vpop.xlane.xlu0 %592
      %v594 = vmax.f32 %v528, %v529
      %595 = vmax.xlane.f32.xlu0 %v594
      %v596 = vpop.xlane.xlu0 %595
      %v597 = vmax.f32 %v530, %v531
      %598 = vmax.xlane.f32.xlu0 %v597
      %v599 = vpop.xlane.xlu0 %598
      %v600 = vmax.f32 %v532, %v533
      %601 = vmax.xlane.f32.xlu0 %v600
      %v602 = vpop.xlane.xlu0 %601
      %v603 = vmax.f32 %v534, %v535
      %604 = vmax.xlane.f32.xlu0 %v603
      %v605 = vpop.xlane.xlu0 %604
      %v606 = vmax.f32 %v536, %v537
      %607 = vmax.xlane.f32.xlu0 %v606
      %v608 = vpop.xlane.xlu0 %607
      %v609 = vmax.f32 %v538, %v539
      %610 = vmax.xlane.f32.xlu0 %v609
      %v611 = vpop.xlane.xlu0 %610
      %vm612 = vcmask 15368
      %613 = vst.msk [vmem:[#allocation3] sm:$0xff] %vm612, %v590
      %614 = vst.msk [vmem:[#allocation3 + $0x8] sm:$0xff] %vm612, %v593
      %615 = vst.msk [vmem:[#allocation3 + $0x10] sm:$0xff] %vm612, %v596
      %616 = vst.msk [vmem:[#allocation3 + $0x18] sm:$0xff] %vm612, %v599
      %617 = vst.msk [vmem:[#allocation3 + $0x20] sm:$0xff] %vm612, %v602
      %618 = vst.msk [vmem:[#allocation3 + $0x28] sm:$0xff] %vm612, %v605
      %619 = vst.msk [vmem:[#allocation3 + $0x30] sm:$0xff] %vm612, %v608
      %620 = vst.msk [vmem:[#allocation3 + $0x38] sm:$0xff] %vm612, %v611
      %v621 = vld [vmem:[#allocation3] sm:$0xff]
      %v622 = vld [vmem:[#allocation3 + $0x8] sm:$0xff]
      %v623 = vld [vmem:[#allocation3 + $0x10] sm:$0xff]
      %v624 = vld [vmem:[#allocation3 + $0x18] sm:$0xff]
      %v625 = vld [vmem:[#allocation3 + $0x20] sm:$0xff]
      %v626 = vld [vmem:[#allocation3 + $0x28] sm:$0xff]
      %v627 = vld [vmem:[#allocation3 + $0x30] sm:$0xff]
      %v628 = vld [vmem:[#allocation3 + $0x38] sm:$0xff]
      %v629 = vld [vmem:[%s2] sm:$0xf]
      %v630 = vld [vmem:[%s3] sm:$0xf]
      %632 = vset.pattern.permute.xlu0 0
      %633 = vperm.xlu0 %632, %v630
      %v634 = vpop.permute.xlu0 %633
      %vm636 = vcmask 523264
      %v638 = vsel %vm636, %v629, 0
      %640 = vmatpush.msra.mxu0 0.0
      %641 = vmatpush.msra.mxu0 0.0
      %642 = vmatpush.msra.mxu0 0.0
      %643 = vmatpush.msra.mxu0 0.0
      %644 = vmatpush.msra.mxu0 0.0
      %645 = vmatpush.msra.mxu0 0.0
      %646 = vmatpush.msra.mxu0 0.0
      %647 = vmatpush.msra.mxu0 0.0
      %648 = vmatpush.msra.mxu0 %v628
      %649 = vmatpush.msra.mxu0 %v627
      %650 = vmatpush.msra.mxu0 %v626
      %651 = vmatpush.msra.mxu0 %v625
      %652 = vmatpush.msra.mxu0 %v624
      %653 = vmatpush.msra.mxu0 %v623
      %654 = vmatpush.msra.mxu0 %v622
      %655 = vmatpush.msra.mxu0 %v621
      %656 = vmatmul.f32.gmra.mxu0 %v638
      %v657 = vpop.f32.mrf.mxu0
      %v658 = vadd.f32 %v634, %v657
      %659 = vdwg.mxu0
      %v660 = vmax.f32 %v658, 0.0
      %v661 = vld [vmem:[%s4] sm:$0xff]
      %v662 = vld [vmem:[%s4 + $0x8] sm:$0xff]
      %v663 = vld [vmem:[%s4 + $0x10] sm:$0xff]
      %v664 = vld [vmem:[%s4 + $0x18] sm:$0xff]
      %v665 = vld [vmem:[%s4 + $0x20] sm:$0xff]
      %v666 = vld [vmem:[%s4 + $0x28] sm:$0xff]
      %v667 = vld [vmem:[%s4 + $0x30] sm:$0xff]
      %v668 = vld [vmem:[%s4 + $0x38] sm:$0xff]
      %v669 = vld [vmem:[%s5] sm:$0xff]
      %v670 = vld [vmem:[%s5 + $0x8] sm:$0xff]
      %v671 = vld [vmem:[%s5 + $0x10] sm:$0xff]
      %v672 = vld [vmem:[%s5 + $0x18] sm:$0xff]
      %v673 = vld [vmem:[%s5 + $0x20] sm:$0xff]
      %v674 = vld [vmem:[%s5 + $0x28] sm:$0xff]
      %v675 = vld [vmem:[%s5 + $0x30] sm:$0xff]
      %v676 = vld [vmem:[%s5 + $0x38] sm:$0xff]
      %678 = vset.pattern.permute.xlu0 0
      %679 = vperm.xlu0 %678, %v669
      %v680 = vpop.permute.xlu0 %679
      %683 = vset.pattern.permute.xlu0 0
      %684 = vperm.xlu0 %683, %v670
      %v685 = vpop.permute.xlu0 %684
      %688 = vset.pattern.permute.xlu0 0
      %689 = vperm.xlu0 %688, %v671
      %v690 = vpop.permute.xlu0 %689
      %693 = vset.pattern.permute.xlu0 0
      %694 = vperm.xlu0 %693, %v672
      %v695 = vpop.permute.xlu0 %694
      %698 = vset.pattern.permute.xlu0 0
      %699 = vperm.xlu0 %698, %v673
      %v700 = vpop.permute.xlu0 %699
      %703 = vset.pattern.permute.xlu0 0
      %704 = vperm.xlu0 %703, %v674
      %v705 = vpop.permute.xlu0 %704
      %708 = vset.pattern.permute.xlu0 0
      %709 = vperm.xlu0 %708, %v675
      %v710 = vpop.permute.xlu0 %709
      %713 = vset.pattern.permute.xlu0 0
      %714 = vperm.xlu0 %713, %v676
      %v715 = vpop.permute.xlu0 %714
      %vm717 = vcmask 31744
      %v719 = vsel %vm717, %v661, 0
      %v722 = vsel %vm717, %v662, 0
      %v725 = vsel %vm717, %v663, 0
      %v728 = vsel %vm717, %v664, 0
      %v731 = vsel %vm717, %v665, 0
      %v734 = vsel %vm717, %v666, 0
      %v737 = vsel %vm717, %v667, 0
      %v740 = vsel %vm717, %v668, 0
      %vm742 = vcmask 1043456
      %v744 = vsel %vm742, %v660, 0
      %746 = vmatpush.msra.mxu0 0.0
      %747 = vmatpush.msra.mxu0 0.0
      %748 = vmatpush.msra.mxu0 0.0
      %749 = vmatpush.msra.mxu0 0.0
      %750 = vmatpush.msra.mxu0 0.0
      %751 = vmatpush.msra.mxu0 0.0
      %752 = vmatpush.msra.mxu0 0.0
      %753 = vmatpush.msra.mxu0 0.0
      %754 = vmatpush.msra.mxu0 0.0
      %755 = vmatpush.msra.mxu0 0.0
      %756 = vmatpush.msra.mxu0 0.0
      %757 = vmatpush.msra.mxu0 0.0
      %758 = vmatpush.msra.mxu0 0.0
      %759 = vmatpush.msra.mxu0 0.0
      %760 = vmatpush.msra.mxu0 0.0
      %761 = vmatpush.msra.mxu0 %v744
      %762 = vmatmul.f32.gmra.mxu0 %v719
      %v763 = vpop.f32.mrf.mxu0
      %v764 = vadd.f32 %v680, %v763
      %765 = vmatmul.f32.gmra.mxu0 %v722
      %v766 = vpop.f32.mrf.mxu0
      %v767 = vadd.f32 %v685, %v766
      %768 = vmatmul.f32.gmra.mxu0 %v725
      %v769 = vpop.f32.mrf.mxu0
      %v770 = vadd.f32 %v690, %v769
      %771 = vmatmul.f32.gmra.mxu0 %v728
      %v772 = vpop.f32.mrf.mxu0
      %v773 = vadd.f32 %v695, %v772
      %774 = vmatmul.f32.gmra.mxu0 %v731
      %v775 = vpop.f32.mrf.mxu0
      %v776 = vadd.f32 %v700, %v775
      %777 = vmatmul.f32.gmra.mxu0 %v734
      %v778 = vpop.f32.mrf.mxu0
      %v779 = vadd.f32 %v705, %v778
      %780 = vmatmul.f32.gmra.mxu0 %v737
      %v781 = vpop.f32.mrf.mxu0
      %v782 = vadd.f32 %v710, %v781
      %783 = vmatmul.f32.gmra.mxu0 %v740
      %v784 = vpop.f32.mrf.mxu0
      %v785 = vadd.f32 %v715, %v784
      %786 = vdwg.mxu0
      %795 = vrot.lane.b32.xlu0 %v764, 127
      %v796 = vpop.permute.xlu0 %795
      %797 = vrot.lane.b32.xlu0 %v767, 127
      %v798 = vpop.permute.xlu0 %797
      %799 = vrot.lane.b32.xlu0 %v770, 127
      %v800 = vpop.permute.xlu0 %799
      %801 = vrot.lane.b32.xlu0 %v773, 127
      %v802 = vpop.permute.xlu0 %801
      %803 = vrot.lane.b32.xlu0 %v776, 127
      %v804 = vpop.permute.xlu0 %803
      %805 = vrot.lane.b32.xlu0 %v779, 127
      %v806 = vpop.permute.xlu0 %805
      %807 = vrot.lane.b32.xlu0 %v782, 127
      %v808 = vpop.permute.xlu0 %807
      %809 = vrot.lane.b32.xlu0 %v785, 127
      %v810 = vpop.permute.xlu0 %809
      %v819 = vadd.f32 %v764, %v796
      %v820 = vadd.f32 %v767, %v798
      %v821 = vadd.f32 %v770, %v800
      %v822 = vadd.f32 %v773, %v802
      %v823 = vadd.f32 %v776, %v804
      %v824 = vadd.f32 %v779, %v806
      %v825 = vadd.f32 %v782, %v808
      %v826 = vadd.f32 %v785, %v810
      %v827 = vadd.f32 %v524, %v526
      %v828 = vadd.f32 %v827, %v528
      %v829 = vadd.f32 %v828, %v530
      %v830 = vadd.f32 %v829, %v532
      %v831 = vadd.f32 %v830, %v534
      %v832 = vadd.f32 %v831, %v536
      %v833 = vadd.f32 %v832, %v538
      %v834 = vrot.slane %v833, 4
      %v835 = vadd.f32 %v833, %v834
      %v836 = vrot.slane %v835, 2
      %v837 = vadd.f32 %v835, %v836
      %v838 = vrot.slane %v837, 1
      %v839 = vadd.f32 %v837, %v838
      %v840 = vadd.f32 %v525, %v527
      %v841 = vadd.f32 %v840, %v529
      %v842 = vadd.f32 %v841, %v531
      %v843 = vadd.f32 %v842, %v533
      %v844 = vadd.f32 %v843, %v535
      %v845 = vadd.f32 %v844, %v537
      %v846 = vadd.f32 %v845, %v539
      %v847 = vrot.slane %v846, 4
      %v848 = vadd.f32 %v846, %v847
      %v849 = vrot.slane %v848, 2
      %v850 = vadd.f32 %v848, %v849
      %v851 = vrot.slane %v850, 1
      %v852 = vadd.f32 %v850, %v851
      %v853 = vrcp.pop 64.0
      %v854 = vmul.f32 64.0, %v853
      %v855 = vsub.f32 1.0, %v854
      %v856 = vmul.f32 %v853, %v855
      %v857 = vadd.f32 %v853, %v856
      %vm858 = vweird.f32 %v853
      %v859 = vsel %vm858, %v853, %v857
      %v860 = vmul.f32 %v839, %v859
      %v861 = vmul.f32 %v852, %v859
      %v864 = vrot.slane %v861, 7
      %vm865 = vcmask 1040384
      %v866 = vsel %vm865, %v860, %v864
      %v868 = vlaneseq
      %vm869 = vcmp.ge.s32.totalorder %v868, 0
      %vm870 = vcmp.lt.s32.totalorder %v868, 256
      %vm871 = vmand %vm869, %vm870
      %872 = vst.msk [vmem:[#allocation2] ss:$4 sm:$0x3] %vm871, %v866
      %v873 = vmax.f32 %v524, %v528
      %v874 = vmax.f32 %v526, %v530
      %v875 = vmax.f32 %v873, %v532
      %v876 = vmax.f32 %v874, %v534
      %v877 = vmax.f32 %v875, %v536
      %v878 = vmax.f32 %v876, %v538
      %v879 = vmax.f32 %v877, %v878
      %v880 = vrot.slane %v879, 4
      %v881 = vmax.f32 %v879, %v880
      %v882 = vrot.slane %v881, 2
      %v883 = vmax.f32 %v881, %v882
      %v884 = vrot.slane %v883, 1
      %v885 = vmax.f32 %v883, %v884
      %v886 = vmax.f32 %v525, %v529
      %v887 = vmax.f32 %v527, %v531
      %v888 = vmax.f32 %v886, %v533
      %v889 = vmax.f32 %v887, %v535
      %v890 = vmax.f32 %v888, %v537
      %v891 = vmax.f32 %v889, %v539
      %v892 = vmax.f32 %v890, %v891
      %v893 = vrot.slane %v892, 4
      %v894 = vmax.f32 %v892, %v893
      %v895 = vrot.slane %v894, 2
      %v896 = vmax.f32 %v894, %v895
      %v897 = vrot.slane %v896, 1
      %v898 = vmax.f32 %v896, %v897
      %v901 = vrot.slane %v898, 7
      %v902 = vsel %vm865, %v885, %v901
      %s904 = scalar_lea.vmem [#allocation2], 1
      %905 = vst.msk [vmem:[%s904] ss:$4 sm:$0x3] %vm871, %v902
      %v906 = vld [vmem:[%s6] sm:$0x3]
      %v907 = vld [vmem:[%s7] sm:$0x3]
      %909 = vset.pattern.permute.xlu0 0
      %910 = vperm.xlu0 %909, %v907
      %v911 = vpop.permute.xlu0 %910
      %v914 = vsel %vm636, %v906, 0
      %916 = vmatpush.msra.mxu0 0.0
      %917 = vmatpush.msra.mxu0 0.0
      %918 = vmatpush.msra.mxu0 0.0
      %919 = vmatpush.msra.mxu0 0.0
      %920 = vmatpush.msra.mxu0 0.0
      %921 = vmatpush.msra.mxu0 0.0
      %922 = vmatpush.msra.mxu0 0.0
      %923 = vmatpush.msra.mxu0 0.0
      %924 = vmatpush.msra.mxu0 %v538
      %925 = vmatpush.msra.mxu0 %v536
      %926 = vmatpush.msra.mxu0 %v534
      %927 = vmatpush.msra.mxu0 %v532
      %928 = vmatpush.msra.mxu0 %v530
      %929 = vmatpush.msra.mxu0 %v528
      %930 = vmatpush.msra.mxu0 %v526
      %931 = vmatpush.msra.mxu0 %v524
      %932 = vmatmul.f32.gmra.mxu0 %v914
      %v933 = vpop.f32.mrf.mxu0
      %v934 = vadd.f32 %v911, %v933
      %935 = vdwg.mxu0
      %936 = vmatpush.msra.mxu0 0.0
      %937 = vmatpush.msra.mxu0 0.0
      %938 = vmatpush.msra.mxu0 0.0
      %939 = vmatpush.msra.mxu0 0.0
      %940 = vmatpush.msra.mxu0 0.0
      %941 = vmatpush.msra.mxu0 0.0
      %942 = vmatpush.msra.mxu0 0.0
      %943 = vmatpush.msra.mxu0 0.0
      %944 = vmatpush.msra.mxu0 %v539
      %945 = vmatpush.msra.mxu0 %v537
      %946 = vmatpush.msra.mxu0 %v535
      %947 = vmatpush.msra.mxu0 %v533
      %948 = vmatpush.msra.mxu0 %v531
      %949 = vmatpush.msra.mxu0 %v529
      %950 = vmatpush.msra.mxu0 %v527
      %951 = vmatpush.msra.mxu0 %v525
      %952 = vmatmul.f32.gmra.mxu0 %v914
      %v953 = vpop.f32.mrf.mxu0
      %v954 = vadd.f32 %v911, %v953
      %955 = vdwg.mxu0
      %v958 = vrot.slane %v954, 4
      %v959 = vsel %vm742, %v934, %v958
      %v960 = vrot.slane %v959, 6
      %962 = vst [vmem:[#allocation2] sm:$0xcc] %v960
      %v963 = vld [vmem:[#allocation2] sm:$0xff]
      %v964 = vld [vmem:[%s8] sm:$0xff]
      %v965 = vld [vmem:[%s8 + $0x8] sm:$0xff]
      %v966 = vld [vmem:[%s8 + $0x10] sm:$0xff]
      %v967 = vld [vmem:[%s8 + $0x18] sm:$0xff]
      %v968 = vld [vmem:[%s8 + $0x20] sm:$0xf]
      %970 = vst [vmem:[#allocation1] ss:$2 sm:$0xff] %v963
      %v971 = vld.sshfl [vmem:[#allocation1] sm:$0xff pattern:$0x75316420]
      %v972 = vld.sshfl [vmem:[#allocation1 + $0x8] sm:$0xff pattern:$0x75316420]
      %v974 = vsel %vm717, %v964, 0
      %v977 = vsel %vm717, %v965, 0
      %v980 = vsel %vm717, %v966, 0
      %v983 = vsel %vm717, %v967, 0
      %v986 = vsel %vm717, %v968, 0
      %v988 = vsel %vm742, %v971, 0
      %v990 = vsel %vm742, %v972, 0
      %992 = vmatpush.msra.mxu0 0.0
      %993 = vmatpush.msra.mxu0 0.0
      %994 = vmatpush.msra.mxu0 0.0
      %995 = vmatpush.msra.mxu0 0.0
      %996 = vmatpush.msra.mxu0 0.0
      %997 = vmatpush.msra.mxu0 0.0
      %998 = vmatpush.msra.mxu0 0.0
      %999 = vmatpush.msra.mxu0 0.0
      %1000 = vmatpush.msra.mxu0 0.0
      %1001 = vmatpush.msra.mxu0 0.0
      %1002 = vmatpush.msra.mxu0 0.0
      %1003 = vmatpush.msra.mxu0 0.0
      %1004 = vmatpush.msra.mxu0 0.0
      %1005 = vmatpush.msra.mxu0 0.0
      %1006 = vmatpush.msra.mxu0 0.0
      %1007 = vmatpush.msra.mxu0 %v988
      %1008 = vmatmul.f32.gmra.mxu0 %v974
      %v1009 = vpop.f32.mrf.mxu0
      %v1010 = vadd.f32 0.0, %v1009
      %1011 = vmatmul.f32.gmra.mxu0 %v977
      %v1012 = vpop.f32.mrf.mxu0
      %v1013 = vadd.f32 0.0, %v1012
      %1014 = vmatmul.f32.gmra.mxu0 %v980
      %v1015 = vpop.f32.mrf.mxu0
      %v1016 = vadd.f32 0.0, %v1015
      %1017 = vmatmul.f32.gmra.mxu0 %v983
      %v1018 = vpop.f32.mrf.mxu0
      %v1019 = vadd.f32 0.0, %v1018
      %1020 = vmatmul.f32.gmra.mxu0 %v986
      %v1021 = vpop.f32.mrf.mxu0
      %v1022 = vadd.f32 0.0, %v1021
      %1023 = vdwg.mxu0
      %1024 = vmatpush.msra.mxu0 0.0
      %1025 = vmatpush.msra.mxu0 0.0
      %1026 = vmatpush.msra.mxu0 0.0
      %1027 = vmatpush.msra.mxu0 0.0
      %1028 = vmatpush.msra.mxu0 0.0
      %1029 = vmatpush.msra.mxu0 0.0
      %1030 = vmatpush.msra.mxu0 0.0
      %1031 = vmatpush.msra.mxu0 0.0
      %1032 = vmatpush.msra.mxu0 0.0
      %1033 = vmatpush.msra.mxu0 0.0
      %1034 = vmatpush.msra.mxu0 0.0
      %1035 = vmatpush.msra.mxu0 0.0
      %1036 = vmatpush.msra.mxu0 0.0
      %1037 = vmatpush.msra.mxu0 0.0
      %1038 = vmatpush.msra.mxu0 0.0
      %1039 = vmatpush.msra.mxu0 %v990
      %1040 = vmatmul.f32.gmra.mxu0 %v974
      %v1041 = vpop.f32.mrf.mxu0
      %v1042 = vadd.f32 0.0, %v1041
      %1043 = vmatmul.f32.gmra.mxu0 %v977
      %v1044 = vpop.f32.mrf.mxu0
      %v1045 = vadd.f32 0.0, %v1044
      %1046 = vmatmul.f32.gmra.mxu0 %v980
      %v1047 = vpop.f32.mrf.mxu0
      %v1048 = vadd.f32 0.0, %v1047
      %1049 = vmatmul.f32.gmra.mxu0 %v983
      %v1050 = vpop.f32.mrf.mxu0
      %v1051 = vadd.f32 0.0, %v1050
      %1052 = vmatmul.f32.gmra.mxu0 %v986
      %v1053 = vpop.f32.mrf.mxu0
      %v1054 = vadd.f32 0.0, %v1053
      %1055 = vdwg.mxu0
      %1056 = vrot.lane.b32.xlu0 %v1010, 17
      %v1057 = vpop.permute.xlu0 %1056
      %1058 = vrot.lane.b32.xlu0 %v1042, 17
      %v1059 = vpop.permute.xlu0 %1058
      %v1060 = vlaneseq
      %v1061 = vand.u32 %v1060, 127
      %vm1062 = vcmp.lt.s32.totalorder %v1061, 17
      %v1063 = vsel %vm1062, %v1057, %v1059
      %v1064 = vsel %vm1062, %v1059, %v1057
      %v1065 = vld [vmem:[%s1] ss:$8 sm:$0x3]
      %v1067 = vperm.slane %v1065, 0
      %v1068 = vperm.slane %v1065, 1
      %v1071 = vmul.f32 %v1064, %v1067
      %v1072 = vmul.f32 %v1063, %v1068
      %v1073 = vadd.f32 %v1071, 0.0
      %v1074 = vadd.f32 %v1072, 0.0
      %v1077 = vrot.slane %v1010, 4
      %v1078 = vrot.slane %v1042, 4
      %1081 = vrot.lane.b32.xlu0 %v1077, 16
      %v1082 = vpop.permute.xlu0 %1081
      %1083 = vrot.lane.b32.xlu0 %v1078, 16
      %v1084 = vpop.permute.xlu0 %1083
      %vm1085 = vcmp.lt.s32.totalorder %v1061, 16
      %v1086 = vsel %vm1085, %v1082, %v1084
      %v1087 = vsel %vm1085, %v1084, %v1082
      %s1088 = scalar_lea.vmem %s1, 1
      %v1089 = vld [vmem:[%s1088] ss:$8 sm:$0x3]
      %v1091 = vperm.slane %v1089, 0
      %v1092 = vperm.slane %v1089, 1
      %v1095 = vmul.f32 %v1087, %v1091
      %v1096 = vmul.f32 %v1086, %v1092
      %v1097 = vadd.f32 %v1073, %v1095
      %v1098 = vadd.f32 %v1074, %v1096
      %1099 = vrot.lane.b32.xlu0 %v1013, 15
      %v1100 = vpop.permute.xlu0 %1099
      %1101 = vrot.lane.b32.xlu0 %v1045, 15
      %v1102 = vpop.permute.xlu0 %1101
      %vm1103 = vcmp.lt.s32.totalorder %v1061, 15
      %v1104 = vsel %vm1103, %v1100, %v1102
      %v1105 = vsel %vm1103, %v1102, %v1100
      %s1106 = scalar_lea.vmem %s1, 2
      %v1107 = vld [vmem:[%s1106] ss:$8 sm:$0x3]
      %v1109 = vperm.slane %v1107, 0
      %v1110 = vperm.slane %v1107, 1
      %v1113 = vmul.f32 %v1105, %v1109
      %v1114 = vmul.f32 %v1104, %v1110
      %v1115 = vadd.f32 %v1097, %v1113
      %v1116 = vadd.f32 %v1098, %v1114
      %v1119 = vrot.slane %v1013, 4
      %v1120 = vrot.slane %v1045, 4
      %1123 = vrot.lane.b32.xlu0 %v1119, 1
      %v1124 = vpop.permute.xlu0 %1123
      %1125 = vrot.lane.b32.xlu0 %v1120, 1
      %v1126 = vpop.permute.xlu0 %1125
      %vm1127 = vcmp.lt.s32.totalorder %v1061, 1
      %v1128 = vsel %vm1127, %v1124, %v1126
      %v1129 = vsel %vm1127, %v1126, %v1124
      %s1130 = scalar_lea.vmem %s1, 3
      %v1131 = vld [vmem:[%s1130] ss:$8 sm:$0x3]
      %v1133 = vperm.slane %v1131, 0
      %v1134 = vperm.slane %v1131, 1
      %v1137 = vmul.f32 %v1129, %v1133
      %v1138 = vmul.f32 %v1128, %v1134
      %v1139 = vadd.f32 %v1115, %v1137
      %v1140 = vadd.f32 %v1116, %v1138
      %v1141 = vadd.f32 %v1139, %v1016
      %v1142 = vadd.f32 %v1140, %v1048
      %v1145 = vrot.slane %v1016, 4
      %v1146 = vrot.slane %v1048, 4
      %1149 = vrot.lane.b32.xlu0 %v1145, 127
      %v1150 = vpop.permute.xlu0 %1149
      %1151 = vrot.lane.b32.xlu0 %v1146, 127
      %v1152 = vpop.permute.xlu0 %1151
      %vm1153 = vcmp.lt.s32.totalorder %v1061, 127
      %v1154 = vsel %vm1153, %v1150, %v1152
      %v1155 = vsel %vm1153, %v1152, %v1150
      %s1156 = scalar_lea.vmem %s1, 5
      %v1157 = vld [vmem:[%s1156] ss:$8 sm:$0x3]
      %v1159 = vperm.slane %v1157, 0
      %v1160 = vperm.slane %v1157, 1
      %v1163 = vmul.f32 %v1154, %v1159
      %v1164 = vmul.f32 %v1155, %v1160
      %v1165 = vadd.f32 %v1141, %v1163
      %v1166 = vadd.f32 %v1142, %v1164
      %1167 = vrot.lane.b32.xlu0 %v1019, 113
      %v1168 = vpop.permute.xlu0 %1167
      %1169 = vrot.lane.b32.xlu0 %v1051, 113
      %v1170 = vpop.permute.xlu0 %1169
      %vm1171 = vcmp.lt.s32.totalorder %v1061, 113
      %v1172 = vsel %vm1171, %v1168, %v1170
      %v1173 = vsel %vm1171, %v1170, %v1168
      %s1174 = scalar_lea.vmem %s1, 6
      %v1175 = vld [vmem:[%s1174] ss:$8 sm:$0x3]
      %v1177 = vperm.slane %v1175, 0
      %v1178 = vperm.slane %v1175, 1
      %v1181 = vmul.f32 %v1172, %v1177
      %v1182 = vmul.f32 %v1173, %v1178
      %v1183 = vadd.f32 %v1165, %v1181
      %v1184 = vadd.f32 %v1166, %v1182
      %v1187 = vrot.slane %v1019, 4
      %v1188 = vrot.slane %v1051, 4
      %1191 = vrot.lane.b32.xlu0 %v1187, 112
      %v1192 = vpop.permute.xlu0 %1191
      %1193 = vrot.lane.b32.xlu0 %v1188, 112
      %v1194 = vpop.permute.xlu0 %1193
      %vm1195 = vcmp.lt.s32.totalorder %v1061, 112
      %v1196 = vsel %vm1195, %v1192, %v1194
      %v1197 = vsel %vm1195, %v1194, %v1192
      %s1198 = scalar_lea.vmem %s1, 7
      %v1199 = vld [vmem:[%s1198] ss:$8 sm:$0x3]
      %v1201 = vperm.slane %v1199, 0
      %v1202 = vperm.slane %v1199, 1
      %v1205 = vmul.f32 %v1196, %v1201
      %v1206 = vmul.f32 %v1197, %v1202
      %v1207 = vadd.f32 %v1183, %v1205
      %v1208 = vadd.f32 %v1184, %v1206
      %1209 = vrot.lane.b32.xlu0 %v1022, 111
      %v1210 = vpop.permute.xlu0 %1209
      %1211 = vrot.lane.b32.xlu0 %v1054, 111
      %v1212 = vpop.permute.xlu0 %1211
      %vm1213 = vcmp.lt.s32.totalorder %v1061, 111
      %v1214 = vsel %vm1213, %v1210, %v1212
      %v1215 = vsel %vm1213, %v1212, %v1210
      %s1216 = scalar_lea.vmem %s1, 16
      %v1217 = vld [vmem:[%s1216] ss:$8 sm:$0x3]
      %v1219 = vperm.slane %v1217, 0
      %v1220 = vperm.slane %v1217, 1
      %v1223 = vmul.f32 %v1214, %v1219
      %v1224 = vmul.f32 %v1215, %v1220
      %v1225 = vadd.f32 %v1207, %v1223
      %v1226 = vadd.f32 %v1208, %v1224
      %v1227 = vld [vmem:[%s9] sm:$0xf]
      %1229 = vset.pattern.permute.xlu0 0
      %1230 = vperm.xlu0 %1229, %v1227
      %v1231 = vpop.permute.xlu0 %1230
      %v1233 = vadd.f32 %v1225, %v1231
      %v1234 = vadd.f32 %v1226, %v1231
      %v1235 = vmax.f32 %v1233, 0.0
      %v1236 = vmax.f32 %v1234, 0.0
      %v1237 = vld [vmem:[%s10] sm:$0xff]
      %v1238 = vld [vmem:[%s10 + $0x8] sm:$0xff]
      %v1239 = vld [vmem:[%s10 + $0x10] sm:$0xff]
      %v1240 = vld [vmem:[%s10 + $0x18] sm:$0xff]
      %v1241 = vld [vmem:[%s10 + $0x20] sm:$0xf]
      %v1243 = vsel %vm717, %v1237, 0
      %v1246 = vsel %vm717, %v1238, 0
      %v1249 = vsel %vm717, %v1239, 0
      %v1252 = vsel %vm717, %v1240, 0
      %v1255 = vsel %vm717, %v1241, 0
      %v1258 = vsel %vm742, %v1235, 0
      %v1261 = vsel %vm742, %v1236, 0
      %1263 = vmatpush.msra.mxu0 0.0
      %1264 = vmatpush.msra.mxu0 0.0
      %1265 = vmatpush.msra.mxu0 0.0
      %1266 = vmatpush.msra.mxu0 0.0
      %1267 = vmatpush.msra.mxu0 0.0
      %1268 = vmatpush.msra.mxu0 0.0
      %1269 = vmatpush.msra.mxu0 0.0
      %1270 = vmatpush.msra.mxu0 0.0
      %1271 = vmatpush.msra.mxu0 0.0
      %1272 = vmatpush.msra.mxu0 0.0
      %1273 = vmatpush.msra.mxu0 0.0
      %1274 = vmatpush.msra.mxu0 0.0
      %1275 = vmatpush.msra.mxu0 0.0
      %1276 = vmatpush.msra.mxu0 0.0
      %1277 = vmatpush.msra.mxu0 0.0
      %1278 = vmatpush.msra.mxu0 %v1258
      %1279 = vmatmul.f32.gmra.mxu0 %v1243
      %v1280 = vpop.f32.mrf.mxu0
      %v1281 = vadd.f32 0.0, %v1280
      %1282 = vmatmul.f32.gmra.mxu0 %v1246
      %v1283 = vpop.f32.mrf.mxu0
      %v1284 = vadd.f32 0.0, %v1283
      %1285 = vmatmul.f32.gmra.mxu0 %v1249
      %v1286 = vpop.f32.mrf.mxu0
      %v1287 = vadd.f32 0.0, %v1286
      %1288 = vmatmul.f32.gmra.mxu0 %v1252
      %v1289 = vpop.f32.mrf.mxu0
      %v1290 = vadd.f32 0.0, %v1289
      %1291 = vmatmul.f32.gmra.mxu0 %v1255
      %v1292 = vpop.f32.mrf.mxu0
      %v1293 = vadd.f32 0.0, %v1292
      %1294 = vdwg.mxu0
      %1295 = vmatpush.msra.mxu0 0.0
      %1296 = vmatpush.msra.mxu0 0.0
      %1297 = vmatpush.msra.mxu0 0.0
      %1298 = vmatpush.msra.mxu0 0.0
      %1299 = vmatpush.msra.mxu0 0.0
      %1300 = vmatpush.msra.mxu0 0.0
      %1301 = vmatpush.msra.mxu0 0.0
      %1302 = vmatpush.msra.mxu0 0.0
      %1303 = vmatpush.msra.mxu0 0.0
      %1304 = vmatpush.msra.mxu0 0.0
      %1305 = vmatpush.msra.mxu0 0.0
      %1306 = vmatpush.msra.mxu0 0.0
      %1307 = vmatpush.msra.mxu0 0.0
      %1308 = vmatpush.msra.mxu0 0.0
      %1309 = vmatpush.msra.mxu0 0.0
      %1310 = vmatpush.msra.mxu0 %v1261
      %1311 = vmatmul.f32.gmra.mxu0 %v1243
      %v1312 = vpop.f32.mrf.mxu0
      %v1313 = vadd.f32 0.0, %v1312
      %1314 = vmatmul.f32.gmra.mxu0 %v1246
      %v1315 = vpop.f32.mrf.mxu0
      %v1316 = vadd.f32 0.0, %v1315
      %1317 = vmatmul.f32.gmra.mxu0 %v1249
      %v1318 = vpop.f32.mrf.mxu0
      %v1319 = vadd.f32 0.0, %v1318
      %1320 = vmatmul.f32.gmra.mxu0 %v1252
      %v1321 = vpop.f32.mrf.mxu0
      %v1322 = vadd.f32 0.0, %v1321
      %1323 = vmatmul.f32.gmra.mxu0 %v1255
      %v1324 = vpop.f32.mrf.mxu0
      %v1325 = vadd.f32 0.0, %v1324
      %1326 = vdwg.mxu0
      %1327 = vrot.lane.b32.xlu0 %v1281, 34
      %v1328 = vpop.permute.xlu0 %1327
      %1329 = vrot.lane.b32.xlu0 %v1313, 34
      %v1330 = vpop.permute.xlu0 %1329
      %vm1331 = vcmp.lt.s32.totalorder %v1061, 34
      %v1332 = vsel %vm1331, %v1328, %v1330
      %v1333 = vsel %vm1331, %v1330, %v1328
      %s1334 = scalar_lea.vmem %s1, 17
      %v1335 = vld [vmem:[%s1334] ss:$8 sm:$0x3]
      %v1337 = vperm.slane %v1335, 0
      %v1338 = vperm.slane %v1335, 1
      %v1341 = vmul.f32 %v1333, %v1337
      %v1342 = vmul.f32 %v1332, %v1338
      %v1343 = vadd.f32 %v1341, 0.0
      %v1344 = vadd.f32 %v1342, 0.0
      %v1347 = vrot.slane %v1281, 4
      %v1348 = vrot.slane %v1313, 4
      %1351 = vrot.lane.b32.xlu0 %v1347, 32
      %v1352 = vpop.permute.xlu0 %1351
      %1353 = vrot.lane.b32.xlu0 %v1348, 32
      %v1354 = vpop.permute.xlu0 %1353
      %vm1355 = vcmp.lt.s32.totalorder %v1061, 32
      %v1356 = vsel %vm1355, %v1352, %v1354
      %v1357 = vsel %vm1355, %v1354, %v1352
      %s1358 = scalar_lea.vmem %s1, 18
      %v1359 = vld [vmem:[%s1358] ss:$8 sm:$0x3]
      %v1361 = vperm.slane %v1359, 0
      %v1362 = vperm.slane %v1359, 1
      %v1365 = vmul.f32 %v1357, %v1361
      %v1366 = vmul.f32 %v1356, %v1362
      %v1367 = vadd.f32 %v1343, %v1365
      %v1368 = vadd.f32 %v1344, %v1366
      %1369 = vrot.lane.b32.xlu0 %v1284, 30
      %v1370 = vpop.permute.xlu0 %1369
      %1371 = vrot.lane.b32.xlu0 %v1316, 30
      %v1372 = vpop.permute.xlu0 %1371
      %vm1373 = vcmp.lt.s32.totalorder %v1061, 30
      %v1374 = vsel %vm1373, %v1370, %v1372
      %v1375 = vsel %vm1373, %v1372, %v1370
      %s1376 = scalar_lea.vmem %s1, 19
      %v1377 = vld [vmem:[%s1376] ss:$8 sm:$0x3]
      %v1379 = vperm.slane %v1377, 0
      %v1380 = vperm.slane %v1377, 1
      %v1383 = vmul.f32 %v1375, %v1379
      %v1384 = vmul.f32 %v1374, %v1380
      %v1385 = vadd.f32 %v1367, %v1383
      %v1386 = vadd.f32 %v1368, %v1384
      %v1389 = vrot.slane %v1284, 4
      %v1390 = vrot.slane %v1316, 4
      %1393 = vrot.lane.b32.xlu0 %v1389, 2
      %v1394 = vpop.permute.xlu0 %1393
      %1395 = vrot.lane.b32.xlu0 %v1390, 2
      %v1396 = vpop.permute.xlu0 %1395
      %vm1397 = vcmp.lt.s32.totalorder %v1061, 2
      %v1398 = vsel %vm1397, %v1394, %v1396
      %v1399 = vsel %vm1397, %v1396, %v1394
      %s1400 = scalar_lea.vmem %s1, 20
      %v1401 = vld [vmem:[%s1400] ss:$8 sm:$0x3]
      %v1403 = vperm.slane %v1401, 0
      %v1404 = vperm.slane %v1401, 1
      %v1407 = vmul.f32 %v1399, %v1403
      %v1408 = vmul.f32 %v1398, %v1404
      %v1409 = vadd.f32 %v1385, %v1407
      %v1410 = vadd.f32 %v1386, %v1408
      %v1411 = vadd.f32 %v1409, %v1287
      %v1412 = vadd.f32 %v1410, %v1319
      %v1415 = vrot.slane %v1287, 4
      %v1416 = vrot.slane %v1319, 4
      %1419 = vrot.lane.b32.xlu0 %v1415, 126
      %v1420 = vpop.permute.xlu0 %1419
      %1421 = vrot.lane.b32.xlu0 %v1416, 126
      %v1422 = vpop.permute.xlu0 %1421
      %vm1423 = vcmp.lt.s32.totalorder %v1061, 126
      %v1424 = vsel %vm1423, %v1420, %v1422
      %v1425 = vsel %vm1423, %v1422, %v1420
      %s1426 = scalar_lea.vmem %s1, 22
      %v1427 = vld [vmem:[%s1426] ss:$8 sm:$0x3]
      %v1429 = vperm.slane %v1427, 0
      %v1430 = vperm.slane %v1427, 1
      %v1433 = vmul.f32 %v1424, %v1429
      %v1434 = vmul.f32 %v1425, %v1430
      %v1435 = vadd.f32 %v1411, %v1433
      %v1436 = vadd.f32 %v1412, %v1434
      %1437 = vrot.lane.b32.xlu0 %v1290, 98
      %v1438 = vpop.permute.xlu0 %1437
      %1439 = vrot.lane.b32.xlu0 %v1322, 98
      %v1440 = vpop.permute.xlu0 %1439
      %vm1441 = vcmp.lt.s32.totalorder %v1061, 98
      %v1442 = vsel %vm1441, %v1438, %v1440
      %v1443 = vsel %vm1441, %v1440, %v1438
      %s1444 = scalar_lea.vmem %s1, 23
      %v1445 = vld [vmem:[%s1444] ss:$8 sm:$0x3]
      %v1447 = vperm.slane %v1445, 0
      %v1448 = vperm.slane %v1445, 1
      %v1451 = vmul.f32 %v1442, %v1447
      %v1452 = vmul.f32 %v1443, %v1448
      %v1453 = vadd.f32 %v1435, %v1451
      %v1454 = vadd.f32 %v1436, %v1452
      %v1457 = vrot.slane %v1290, 4
      %v1458 = vrot.slane %v1322, 4
      %1461 = vrot.lane.b32.xlu0 %v1457, 96
      %v1462 = vpop.permute.xlu0 %1461
      %1463 = vrot.lane.b32.xlu0 %v1458, 96
      %v1464 = vpop.permute.xlu0 %1463
      %vm1465 = vcmp.lt.s32.totalorder %v1061, 96
      %v1466 = vsel %vm1465, %v1462, %v1464
      %v1467 = vsel %vm1465, %v1464, %v1462
      %s1468 = scalar_lea.vmem %s1, 32
      %v1469 = vld [vmem:[%s1468] ss:$8 sm:$0x3]
      %v1471 = vperm.slane %v1469, 0
      %v1472 = vperm.slane %v1469, 1
      %v1475 = vmul.f32 %v1466, %v1471
      %v1476 = vmul.f32 %v1467, %v1472
      %v1477 = vadd.f32 %v1453, %v1475
      %v1478 = vadd.f32 %v1454, %v1476
      %1479 = vrot.lane.b32.xlu0 %v1293, 94
      %v1480 = vpop.permute.xlu0 %1479
      %1481 = vrot.lane.b32.xlu0 %v1325, 94
      %v1482 = vpop.permute.xlu0 %1481
      %vm1483 = vcmp.lt.s32.totalorder %v1061, 94
      %v1484 = vsel %vm1483, %v1480, %v1482
      %v1485 = vsel %vm1483, %v1482, %v1480
      %s1486 = scalar_lea.vmem %s1, 33
      %v1487 = vld [vmem:[%s1486] ss:$8 sm:$0x3]
      %v1489 = vperm.slane %v1487, 0
      %v1490 = vperm.slane %v1487, 1
      %v1493 = vmul.f32 %v1484, %v1489
      %v1494 = vmul.f32 %v1485, %v1490
      %v1495 = vadd.f32 %v1477, %v1493
      %v1496 = vadd.f32 %v1478, %v1494
      %v1497 = vld [vmem:[%s11] sm:$0xf]
      %1499 = vset.pattern.permute.xlu0 0
      %1500 = vperm.xlu0 %1499, %v1497
      %v1501 = vpop.permute.xlu0 %1500
      %v1503 = vadd.f32 %v1495, %v1501
      %v1504 = vadd.f32 %v1496, %v1501
      %v1505 = vmax.f32 %v1503, 0.0
      %v1506 = vmax.f32 %v1504, 0.0
      %v1507 = vld [vmem:[%s12] sm:$0xff]
      %v1508 = vld [vmem:[%s12 + $0x8] sm:$0xff]
      %v1509 = vld [vmem:[%s12 + $0x10] sm:$0xff]
      %v1510 = vld [vmem:[%s12 + $0x18] sm:$0xff]
      %v1511 = vld [vmem:[%s12 + $0x20] sm:$0xf]
      %v1513 = vsel %vm717, %v1507, 0
      %v1516 = vsel %vm717, %v1508, 0
      %v1519 = vsel %vm717, %v1509, 0
      %v1522 = vsel %vm717, %v1510, 0
      %v1525 = vsel %vm717, %v1511, 0
      %v1528 = vsel %vm742, %v1505, 0
      %v1531 = vsel %vm742, %v1506, 0
      %1533 = vmatpush.msra.mxu0 0.0
      %1534 = vmatpush.msra.mxu0 0.0
      %1535 = vmatpush.msra.mxu0 0.0
      %1536 = vmatpush.msra.mxu0 0.0
      %1537 = vmatpush.msra.mxu0 0.0
      %1538 = vmatpush.msra.mxu0 0.0
      %1539 = vmatpush.msra.mxu0 0.0
      %1540 = vmatpush.msra.mxu0 0.0
      %1541 = vmatpush.msra.mxu0 0.0
      %1542 = vmatpush.msra.mxu0 0.0
      %1543 = vmatpush.msra.mxu0 0.0
      %1544 = vmatpush.msra.mxu0 0.0
      %1545 = vmatpush.msra.mxu0 0.0
      %1546 = vmatpush.msra.mxu0 0.0
      %1547 = vmatpush.msra.mxu0 0.0
      %1548 = vmatpush.msra.mxu0 %v1528
      %1549 = vmatmul.f32.gmra.mxu0 %v1513
      %v1550 = vpop.f32.mrf.mxu0
      %v1551 = vadd.f32 0.0, %v1550
      %1552 = vmatmul.f32.gmra.mxu0 %v1516
      %v1553 = vpop.f32.mrf.mxu0
      %v1554 = vadd.f32 0.0, %v1553
      %1555 = vmatmul.f32.gmra.mxu0 %v1519
      %v1556 = vpop.f32.mrf.mxu0
      %v1557 = vadd.f32 0.0, %v1556
      %1558 = vmatmul.f32.gmra.mxu0 %v1522
      %v1559 = vpop.f32.mrf.mxu0
      %v1560 = vadd.f32 0.0, %v1559
      %1561 = vmatmul.f32.gmra.mxu0 %v1525
      %v1562 = vpop.f32.mrf.mxu0
      %v1563 = vadd.f32 0.0, %v1562
      %1564 = vdwg.mxu0
      %1565 = vmatpush.msra.mxu0 0.0
      %1566 = vmatpush.msra.mxu0 0.0
      %1567 = vmatpush.msra.mxu0 0.0
      %1568 = vmatpush.msra.mxu0 0.0
      %1569 = vmatpush.msra.mxu0 0.0
      %1570 = vmatpush.msra.mxu0 0.0
      %1571 = vmatpush.msra.mxu0 0.0
      %1572 = vmatpush.msra.mxu0 0.0
      %1573 = vmatpush.msra.mxu0 0.0
      %1574 = vmatpush.msra.mxu0 0.0
      %1575 = vmatpush.msra.mxu0 0.0
      %1576 = vmatpush.msra.mxu0 0.0
      %1577 = vmatpush.msra.mxu0 0.0
      %1578 = vmatpush.msra.mxu0 0.0
      %1579 = vmatpush.msra.mxu0 0.0
      %1580 = vmatpush.msra.mxu0 %v1531
      %1581 = vmatmul.f32.gmra.mxu0 %v1513
      %v1582 = vpop.f32.mrf.mxu0
      %v1583 = vadd.f32 0.0, %v1582
      %1584 = vmatmul.f32.gmra.mxu0 %v1516
      %v1585 = vpop.f32.mrf.mxu0
      %v1586 = vadd.f32 0.0, %v1585
      %1587 = vmatmul.f32.gmra.mxu0 %v1519
      %v1588 = vpop.f32.mrf.mxu0
      %v1589 = vadd.f32 0.0, %v1588
      %1590 = vmatmul.f32.gmra.mxu0 %v1522
      %v1591 = vpop.f32.mrf.mxu0
      %v1592 = vadd.f32 0.0, %v1591
      %1593 = vmatmul.f32.gmra.mxu0 %v1525
      %v1594 = vpop.f32.mrf.mxu0
      %v1595 = vadd.f32 0.0, %v1594
      %1596 = vdwg.mxu0
      %1597 = vrot.lane.b32.xlu0 %v1551, 85
      %v1598 = vpop.permute.xlu0 %1597
      %1599 = vrot.lane.b32.xlu0 %v1583, 85
      %v1600 = vpop.permute.xlu0 %1599
      %vm1601 = vcmp.lt.s32.totalorder %v1061, 85
      %v1602 = vsel %vm1601, %v1598, %v1600
      %v1603 = vsel %vm1601, %v1600, %v1598
      %s1604 = scalar_lea.vmem %s1, 34
      %v1605 = vld [vmem:[%s1604] ss:$8 sm:$0x3]
      %v1607 = vperm.slane %v1605, 0
      %v1608 = vperm.slane %v1605, 1
      %v1611 = vmul.f32 %v1603, %v1607
      %v1612 = vmul.f32 %v1602, %v1608
      %v1613 = vadd.f32 %v1611, 0.0
      %v1614 = vadd.f32 %v1612, 0.0
      %v1617 = vrot.slane %v1551, 4
      %v1618 = vrot.slane %v1583, 4
      %1621 = vrot.lane.b32.xlu0 %v1617, 80
      %v1622 = vpop.permute.xlu0 %1621
      %1623 = vrot.lane.b32.xlu0 %v1618, 80
      %v1624 = vpop.permute.xlu0 %1623
      %vm1625 = vcmp.lt.s32.totalorder %v1061, 80
      %v1626 = vsel %vm1625, %v1622, %v1624
      %v1627 = vsel %vm1625, %v1624, %v1622
      %s1628 = scalar_lea.vmem %s1, 35
      %v1629 = vld [vmem:[%s1628] ss:$8 sm:$0x3]
      %v1631 = vperm.slane %v1629, 0
      %v1632 = vperm.slane %v1629, 1
      %v1635 = vmul.f32 %v1627, %v1631
      %v1636 = vmul.f32 %v1626, %v1632
      %v1637 = vadd.f32 %v1613, %v1635
      %v1638 = vadd.f32 %v1614, %v1636
      %1639 = vrot.lane.b32.xlu0 %v1554, 75
      %v1640 = vpop.permute.xlu0 %1639
      %1641 = vrot.lane.b32.xlu0 %v1586, 75
      %v1642 = vpop.permute.xlu0 %1641
      %vm1643 = vcmp.lt.s32.totalorder %v1061, 75
      %v1644 = vsel %vm1643, %v1640, %v1642
      %v1645 = vsel %vm1643, %v1642, %v1640
      %s1646 = scalar_lea.vmem %s1, 36
      %v1647 = vld [vmem:[%s1646] ss:$8 sm:$0x3]
      %v1649 = vperm.slane %v1647, 0
      %v1650 = vperm.slane %v1647, 1
      %v1653 = vmul.f32 %v1645, %v1649
      %v1654 = vmul.f32 %v1644, %v1650
      %v1655 = vadd.f32 %v1637, %v1653
      %v1656 = vadd.f32 %v1638, %v1654
      %v1659 = vrot.slane %v1554, 4
      %v1660 = vrot.slane %v1586, 4
      %1663 = vrot.lane.b32.xlu0 %v1659, 5
      %v1664 = vpop.permute.xlu0 %1663
      %1665 = vrot.lane.b32.xlu0 %v1660, 5
      %v1666 = vpop.permute.xlu0 %1665
      %vm1667 = vcmp.lt.s32.totalorder %v1061, 5
      %v1668 = vsel %vm1667, %v1664, %v1666
      %v1669 = vsel %vm1667, %v1666, %v1664
      %s1670 = scalar_lea.vmem %s1, 37
      %v1671 = vld [vmem:[%s1670] ss:$8 sm:$0x3]
      %v1673 = vperm.slane %v1671, 0
      %v1674 = vperm.slane %v1671, 1
      %v1677 = vmul.f32 %v1669, %v1673
      %v1678 = vmul.f32 %v1668, %v1674
      %v1679 = vadd.f32 %v1655, %v1677
      %v1680 = vadd.f32 %v1656, %v1678
      %v1681 = vadd.f32 %v1679, %v1557
      %v1682 = vadd.f32 %v1680, %v1589
      %v1685 = vrot.slane %v1557, 4
      %v1686 = vrot.slane %v1589, 4
      %1689 = vrot.lane.b32.xlu0 %v1685, 123
      %v1690 = vpop.permute.xlu0 %1689
      %1691 = vrot.lane.b32.xlu0 %v1686, 123
      %v1692 = vpop.permute.xlu0 %1691
      %vm1693 = vcmp.lt.s32.totalorder %v1061, 123
      %v1694 = vsel %vm1693, %v1690, %v1692
      %v1695 = vsel %vm1693, %v1692, %v1690
      %s1696 = scalar_lea.vmem %s1, 39
      %v1697 = vld [vmem:[%s1696] ss:$8 sm:$0x3]
      %v1699 = vperm.slane %v1697, 0
      %v1700 = vperm.slane %v1697, 1
      %v1703 = vmul.f32 %v1694, %v1699
      %v1704 = vmul.f32 %v1695, %v1700
      %v1705 = vadd.f32 %v1681, %v1703
      %v1706 = vadd.f32 %v1682, %v1704
      %1707 = vrot.lane.b32.xlu0 %v1560, 53
      %v1708 = vpop.permute.xlu0 %1707
      %1709 = vrot.lane.b32.xlu0 %v1592, 53
      %v1710 = vpop.permute.xlu0 %1709
      %vm1711 = vcmp.lt.s32.totalorder %v1061, 53
      %v1712 = vsel %vm1711, %v1708, %v1710
      %v1713 = vsel %vm1711, %v1710, %v1708
      %s1714 = scalar_lea.vmem %s1, 48
      %v1715 = vld [vmem:[%s1714] ss:$8 sm:$0x3]
      %v1717 = vperm.slane %v1715, 0
      %v1718 = vperm.slane %v1715, 1
      %v1721 = vmul.f32 %v1712, %v1717
      %v1722 = vmul.f32 %v1713, %v1718
      %v1723 = vadd.f32 %v1705, %v1721
      %v1724 = vadd.f32 %v1706, %v1722
      %v1727 = vrot.slane %v1560, 4
      %v1728 = vrot.slane %v1592, 4
      %1731 = vrot.lane.b32.xlu0 %v1727, 48
      %v1732 = vpop.permute.xlu0 %1731
      %1733 = vrot.lane.b32.xlu0 %v1728, 48
      %v1734 = vpop.permute.xlu0 %1733
      %vm1735 = vcmp.lt.s32.totalorder %v1061, 48
      %v1736 = vsel %vm1735, %v1732, %v1734
      %v1737 = vsel %vm1735, %v1734, %v1732
      %s1738 = scalar_lea.vmem %s1, 49
      %v1739 = vld [vmem:[%s1738] ss:$8 sm:$0x3]
      %v1741 = vperm.slane %v1739, 0
      %v1742 = vperm.slane %v1739, 1
      %v1745 = vmul.f32 %v1736, %v1741
      %v1746 = vmul.f32 %v1737, %v1742
      %v1747 = vadd.f32 %v1723, %v1745
      %v1748 = vadd.f32 %v1724, %v1746
      %1749 = vrot.lane.b32.xlu0 %v1563, 43
      %v1750 = vpop.permute.xlu0 %1749
      %1751 = vrot.lane.b32.xlu0 %v1595, 43
      %v1752 = vpop.permute.xlu0 %1751
      %vm1753 = vcmp.lt.s32.totalorder %v1061, 43
      %v1754 = vsel %vm1753, %v1750, %v1752
      %v1755 = vsel %vm1753, %v1752, %v1750
      %s1756 = scalar_lea.vmem %s1, 50
      %v1757 = vld [vmem:[%s1756] ss:$8 sm:$0x3]
      %v1759 = vperm.slane %v1757, 0
      %v1760 = vperm.slane %v1757, 1
      %v1763 = vmul.f32 %v1754, %v1759
      %v1764 = vmul.f32 %v1755, %v1760
      %v1765 = vadd.f32 %v1747, %v1763
      %v1766 = vadd.f32 %v1748, %v1764
      %v1767 = vld [vmem:[%s13] sm:$0xf]
      %1769 = vset.pattern.permute.xlu0 0
      %1770 = vperm.xlu0 %1769, %v1767
      %v1771 = vpop.permute.xlu0 %1770
      %v1773 = vadd.f32 %v1765, %v1771
      %v1774 = vadd.f32 %v1766, %v1771
      %v1775 = vmax.f32 %v1773, 0.0
      %v1776 = vmax.f32 %v1774, 0.0
      %v1777 = vld [vmem:[%s14] sm:$0x1]
      %v1778 = vld [vmem:[#allocation4] sm:$0x1]
      %1780 = vset.pattern.permute.xlu0 0
      %1781 = vperm.xlu0 %1780, %v1778
      %v1782 = vpop.permute.xlu0 %1781
      %v1784 = vperm.slane %v1782, 0
      %v1786 = vsel %vm717, %v1777, 0
      %v1789 = vsel %vm742, %v1775, 0
      %v1792 = vsel %vm742, %v1776, 0
      %1794 = vmatpush.msra.mxu0 0.0
      %1795 = vmatpush.msra.mxu0 0.0
      %1796 = vmatpush.msra.mxu0 0.0
      %1797 = vmatpush.msra.mxu0 0.0
      %1798 = vmatpush.msra.mxu0 0.0
      %1799 = vmatpush.msra.mxu0 0.0
      %1800 = vmatpush.msra.mxu0 0.0
      %1801 = vmatpush.msra.mxu0 0.0
      %1802 = vmatpush.msra.mxu0 0.0
      %1803 = vmatpush.msra.mxu0 0.0
      %1804 = vmatpush.msra.mxu0 0.0
      %1805 = vmatpush.msra.mxu0 0.0
      %1806 = vmatpush.msra.mxu0 0.0
      %1807 = vmatpush.msra.mxu0 0.0
      %1808 = vmatpush.msra.mxu0 0.0
      %1809 = vmatpush.msra.mxu0 %v1789
      %1810 = vmatmul.f32.gmra.mxu0 %v1786
      %v1811 = vpop.f32.mrf.mxu0
      %v1812 = vadd.f32 %v1784, %v1811
      %1813 = vdwg.mxu0
      %1814 = vmatpush.msra.mxu0 0.0
      %1815 = vmatpush.msra.mxu0 0.0
      %1816 = vmatpush.msra.mxu0 0.0
      %1817 = vmatpush.msra.mxu0 0.0
      %1818 = vmatpush.msra.mxu0 0.0
      %1819 = vmatpush.msra.mxu0 0.0
      %1820 = vmatpush.msra.mxu0 0.0
      %1821 = vmatpush.msra.mxu0 0.0
      %1822 = vmatpush.msra.mxu0 0.0
      %1823 = vmatpush.msra.mxu0 0.0
      %1824 = vmatpush.msra.mxu0 0.0
      %1825 = vmatpush.msra.mxu0 0.0
      %1826 = vmatpush.msra.mxu0 0.0
      %1827 = vmatpush.msra.mxu0 0.0
      %1828 = vmatpush.msra.mxu0 0.0
      %1829 = vmatpush.msra.mxu0 %v1792
      %1830 = vmatmul.f32.gmra.mxu0 %v1786
      %v1831 = vpop.f32.mrf.mxu0
      %v1832 = vadd.f32 %v1784, %v1831
      %1833 = vdwg.mxu0
      %1835 = vset.pattern.permute.xlu0 0
      %1836 = vperm.xlu0 %1835, %v819
      %v1837 = vpop.permute.xlu0 %1836
      %1840 = vset.pattern.permute.xlu0 0
      %1841 = vperm.xlu0 %1840, %v820
      %v1842 = vpop.permute.xlu0 %1841
      %1845 = vset.pattern.permute.xlu0 0
      %1846 = vperm.xlu0 %1845, %v821
      %v1847 = vpop.permute.xlu0 %1846
      %1850 = vset.pattern.permute.xlu0 0
      %1851 = vperm.xlu0 %1850, %v822
      %v1852 = vpop.permute.xlu0 %1851
      %1855 = vset.pattern.permute.xlu0 0
      %1856 = vperm.xlu0 %1855, %v823
      %v1857 = vpop.permute.xlu0 %1856
      %1860 = vset.pattern.permute.xlu0 0
      %1861 = vperm.xlu0 %1860, %v824
      %v1862 = vpop.permute.xlu0 %1861
      %1865 = vset.pattern.permute.xlu0 0
      %1866 = vperm.xlu0 %1865, %v825
      %v1867 = vpop.permute.xlu0 %1866
      %1870 = vset.pattern.permute.xlu0 0
      %1871 = vperm.xlu0 %1870, %v826
      %v1872 = vpop.permute.xlu0 %1871
      %v1874 = vperm.slane %v1812, 0
      %v1875 = vperm.slane %v1832, 0
      %v1876 = vmul.f32 %v1837, %v1874
      %v1877 = vmul.f32 %v1837, %v1875
      %v1878 = vmul.f32 %v1842, %v1874
      %v1879 = vmul.f32 %v1842, %v1875
      %v1880 = vmul.f32 %v1847, %v1874
      %v1881 = vmul.f32 %v1847, %v1875
      %v1882 = vmul.f32 %v1852, %v1874
      %v1883 = vmul.f32 %v1852, %v1875
      %v1884 = vmul.f32 %v1857, %v1874
      %v1885 = vmul.f32 %v1857, %v1875
      %v1886 = vmul.f32 %v1862, %v1874
      %v1887 = vmul.f32 %v1862, %v1875
      %v1888 = vmul.f32 %v1867, %v1874
      %v1889 = vmul.f32 %v1867, %v1875
      %v1890 = vmul.f32 %v1872, %v1874
      %v1891 = vmul.f32 %v1872, %v1875
      %v1892 = vsub.f32 0.0, %v1876
      %v1893 = vsub.f32 0.0, %v1877
      %v1894 = vsub.f32 0.0, %v1878
      %v1895 = vsub.f32 0.0, %v1879
      %v1896 = vsub.f32 0.0, %v1880
      %v1897 = vsub.f32 0.0, %v1881
      %v1898 = vsub.f32 0.0, %v1882
      %v1899 = vsub.f32 0.0, %v1883
      %v1900 = vsub.f32 0.0, %v1884
      %v1901 = vsub.f32 0.0, %v1885
      %v1902 = vsub.f32 0.0, %v1886
      %v1903 = vsub.f32 0.0, %v1887
      %v1904 = vsub.f32 0.0, %v1888
      %v1905 = vsub.f32 0.0, %v1889
      %v1906 = vsub.f32 0.0, %v1890
      %v1907 = vsub.f32 0.0, %v1891
      %v1908 = vmul.f32 %v1892, 1.442695
      %v1909 = vpow.pop %v1908
      %v1910 = vmul.f32 %v1893, 1.442695
      %v1911 = vpow.pop %v1910
      %v1912 = vmul.f32 %v1894, 1.442695
      %v1913 = vpow.pop %v1912
      %v1914 = vmul.f32 %v1895, 1.442695
      %v1915 = vpow.pop %v1914
      %v1916 = vmul.f32 %v1896, 1.442695
      %v1917 = vpow.pop %v1916
      %v1918 = vmul.f32 %v1897, 1.442695
      %v1919 = vpow.pop %v1918
      %v1920 = vmul.f32 %v1898, 1.442695
      %v1921 = vpow.pop %v1920
      %v1922 = vmul.f32 %v1899, 1.442695
      %v1923 = vpow.pop %v1922
      %v1924 = vmul.f32 %v1900, 1.442695
      %v1925 = vpow.pop %v1924
      %v1926 = vmul.f32 %v1901, 1.442695
      %v1927 = vpow.pop %v1926
      %v1928 = vmul.f32 %v1902, 1.442695
      %v1929 = vpow.pop %v1928
      %v1930 = vmul.f32 %v1903, 1.442695
      %v1931 = vpow.pop %v1930
      %v1932 = vmul.f32 %v1904, 1.442695
      %v1933 = vpow.pop %v1932
      %v1934 = vmul.f32 %v1905, 1.442695
      %v1935 = vpow.pop %v1934
      %v1936 = vmul.f32 %v1906, 1.442695
      %v1937 = vpow.pop %v1936
      %v1938 = vmul.f32 %v1907, 1.442695
      %v1939 = vpow.pop %v1938
      %v1940 = vadd.f32 %v1909, 1.0
      %v1941 = vadd.f32 %v1911, 1.0
      %v1942 = vadd.f32 %v1913, 1.0
      %v1943 = vadd.f32 %v1915, 1.0
      %v1944 = vadd.f32 %v1917, 1.0
      %v1945 = vadd.f32 %v1919, 1.0
      %v1946 = vadd.f32 %v1921, 1.0
      %v1947 = vadd.f32 %v1923, 1.0
      %v1948 = vadd.f32 %v1925, 1.0
      %v1949 = vadd.f32 %v1927, 1.0
      %v1950 = vadd.f32 %v1929, 1.0
      %v1951 = vadd.f32 %v1931, 1.0
      %v1952 = vadd.f32 %v1933, 1.0
      %v1953 = vadd.f32 %v1935, 1.0
      %v1954 = vadd.f32 %v1937, 1.0
      %v1955 = vadd.f32 %v1939, 1.0
      %v1956 = vrcp.pop %v1940
      %v1957 = vmul.f32 %v1940, %v1956
      %v1958 = vsub.f32 1.0, %v1957
      %v1959 = vmul.f32 %v1956, %v1958
      %v1960 = vadd.f32 %v1956, %v1959
      %vm1961 = vweird.f32 %v1940
      %vm1962 = vweird.f32 %v1956
      %vm1963 = vmor %vm1961, %vm1962
      %v1964 = vsel %vm1963, %v1956, %v1960
      %v1965 = vand.u32 2147483647, %v1940
      %vm1966 = vcmp.eq.f32.partialorder %v1965, 8.507059e+37
      %v1967 = vand.u32 %v1940, 2147483648
      %v1968 = vor.u32 1.1754944e-38, %v1967
      %v1969 = vsel %vm1966, %v1968, %v1964
      %v1970 = vmul.f32 1.0, %v1969
      %v1971 = vrcp.pop %v1941
      %v1972 = vmul.f32 %v1941, %v1971
      %v1973 = vsub.f32 1.0, %v1972
      %v1974 = vmul.f32 %v1971, %v1973
      %v1975 = vadd.f32 %v1971, %v1974
      %vm1976 = vweird.f32 %v1941
      %vm1977 = vweird.f32 %v1971
      %vm1978 = vmor %vm1976, %vm1977
      %v1979 = vsel %vm1978, %v1971, %v1975
      %v1980 = vand.u32 2147483647, %v1941
      %vm1981 = vcmp.eq.f32.partialorder %v1980, 8.507059e+37
      %v1982 = vand.u32 %v1941, 2147483648
      %v1983 = vor.u32 1.1754944e-38, %v1982
      %v1984 = vsel %vm1981, %v1983, %v1979
      %v1985 = vmul.f32 1.0, %v1984
      %v1986 = vrcp.pop %v1942
      %v1987 = vmul.f32 %v1942, %v1986
      %v1988 = vsub.f32 1.0, %v1987
      %v1989 = vmul.f32 %v1986, %v1988
      %v1990 = vadd.f32 %v1986, %v1989
      %vm1991 = vweird.f32 %v1942
      %vm1992 = vweird.f32 %v1986
      %vm1993 = vmor %vm1991, %vm1992
      %v1994 = vsel %vm1993, %v1986, %v1990
      %v1995 = vand.u32 2147483647, %v1942
      %vm1996 = vcmp.eq.f32.partialorder %v1995, 8.507059e+37
      %v1997 = vand.u32 %v1942, 2147483648
      %v1998 = vor.u32 1.1754944e-38, %v1997
      %v1999 = vsel %vm1996, %v1998, %v1994
      %v2000 = vmul.f32 1.0, %v1999
      %v2001 = vrcp.pop %v1943
      %v2002 = vmul.f32 %v1943, %v2001
      %v2003 = vsub.f32 1.0, %v2002
      %v2004 = vmul.f32 %v2001, %v2003
      %v2005 = vadd.f32 %v2001, %v2004
      %vm2006 = vweird.f32 %v1943
      %vm2007 = vweird.f32 %v2001
      %vm2008 = vmor %vm2006, %vm2007
      %v2009 = vsel %vm2008, %v2001, %v2005
      %v2010 = vand.u32 2147483647, %v1943
      %vm2011 = vcmp.eq.f32.partialorder %v2010, 8.507059e+37
      %v2012 = vand.u32 %v1943, 2147483648
      %v2013 = vor.u32 1.1754944e-38, %v2012
      %v2014 = vsel %vm2011, %v2013, %v2009
      %v2015 = vmul.f32 1.0, %v2014
      %v2016 = vrcp.pop %v1944
      %v2017 = vmul.f32 %v1944, %v2016
      %v2018 = vsub.f32 1.0, %v2017
      %v2019 = vmul.f32 %v2016, %v2018
      %v2020 = vadd.f32 %v2016, %v2019
      %vm2021 = vweird.f32 %v1944
      %vm2022 = vweird.f32 %v2016
      %vm2023 = vmor %vm2021, %vm2022
      %v2024 = vsel %vm2023, %v2016, %v2020
      %v2025 = vand.u32 2147483647, %v1944
      %vm2026 = vcmp.eq.f32.partialorder %v2025, 8.507059e+37
      %v2027 = vand.u32 %v1944, 2147483648
      %v2028 = vor.u32 1.1754944e-38, %v2027
      %v2029 = vsel %vm2026, %v2028, %v2024
      %v2030 = vmul.f32 1.0, %v2029
      %v2031 = vrcp.pop %v1945
      %v2032 = vmul.f32 %v1945, %v2031
      %v2033 = vsub.f32 1.0, %v2032
      %v2034 = vmul.f32 %v2031, %v2033
      %v2035 = vadd.f32 %v2031, %v2034
      %vm2036 = vweird.f32 %v1945
      %vm2037 = vweird.f32 %v2031
      %vm2038 = vmor %vm2036, %vm2037
      %v2039 = vsel %vm2038, %v2031, %v2035
      %v2040 = vand.u32 2147483647, %v1945
      %vm2041 = vcmp.eq.f32.partialorder %v2040, 8.507059e+37
      %v2042 = vand.u32 %v1945, 2147483648
      %v2043 = vor.u32 1.1754944e-38, %v2042
      %v2044 = vsel %vm2041, %v2043, %v2039
      %v2045 = vmul.f32 1.0, %v2044
      %v2046 = vrcp.pop %v1946
      %v2047 = vmul.f32 %v1946, %v2046
      %v2048 = vsub.f32 1.0, %v2047
      %v2049 = vmul.f32 %v2046, %v2048
      %v2050 = vadd.f32 %v2046, %v2049
      %vm2051 = vweird.f32 %v1946
      %vm2052 = vweird.f32 %v2046
      %vm2053 = vmor %vm2051, %vm2052
      %v2054 = vsel %vm2053, %v2046, %v2050
      %v2055 = vand.u32 2147483647, %v1946
      %vm2056 = vcmp.eq.f32.partialorder %v2055, 8.507059e+37
      %v2057 = vand.u32 %v1946, 2147483648
      %v2058 = vor.u32 1.1754944e-38, %v2057
      %v2059 = vsel %vm2056, %v2058, %v2054
      %v2060 = vmul.f32 1.0, %v2059
      %v2061 = vrcp.pop %v1947
      %v2062 = vmul.f32 %v1947, %v2061
      %v2063 = vsub.f32 1.0, %v2062
      %v2064 = vmul.f32 %v2061, %v2063
      %v2065 = vadd.f32 %v2061, %v2064
      %vm2066 = vweird.f32 %v1947
      %vm2067 = vweird.f32 %v2061
      %vm2068 = vmor %vm2066, %vm2067
      %v2069 = vsel %vm2068, %v2061, %v2065
      %v2070 = vand.u32 2147483647, %v1947
      %vm2071 = vcmp.eq.f32.partialorder %v2070, 8.507059e+37
      %v2072 = vand.u32 %v1947, 2147483648
      %v2073 = vor.u32 1.1754944e-38, %v2072
      %v2074 = vsel %vm2071, %v2073, %v2069
      %v2075 = vmul.f32 1.0, %v2074
      %v2076 = vrcp.pop %v1948
      %v2077 = vmul.f32 %v1948, %v2076
      %v2078 = vsub.f32 1.0, %v2077
      %v2079 = vmul.f32 %v2076, %v2078
      %v2080 = vadd.f32 %v2076, %v2079
      %vm2081 = vweird.f32 %v1948
      %vm2082 = vweird.f32 %v2076
      %vm2083 = vmor %vm2081, %vm2082
      %v2084 = vsel %vm2083, %v2076, %v2080
      %v2085 = vand.u32 2147483647, %v1948
      %vm2086 = vcmp.eq.f32.partialorder %v2085, 8.507059e+37
      %v2087 = vand.u32 %v1948, 2147483648
      %v2088 = vor.u32 1.1754944e-38, %v2087
      %v2089 = vsel %vm2086, %v2088, %v2084
      %v2090 = vmul.f32 1.0, %v2089
      %v2091 = vrcp.pop %v1949
      %v2092 = vmul.f32 %v1949, %v2091
      %v2093 = vsub.f32 1.0, %v2092
      %v2094 = vmul.f32 %v2091, %v2093
      %v2095 = vadd.f32 %v2091, %v2094
      %vm2096 = vweird.f32 %v1949
      %vm2097 = vweird.f32 %v2091
      %vm2098 = vmor %vm2096, %vm2097
      %v2099 = vsel %vm2098, %v2091, %v2095
      %v2100 = vand.u32 2147483647, %v1949
      %vm2101 = vcmp.eq.f32.partialorder %v2100, 8.507059e+37
      %v2102 = vand.u32 %v1949, 2147483648
      %v2103 = vor.u32 1.1754944e-38, %v2102
      %v2104 = vsel %vm2101, %v2103, %v2099
      %v2105 = vmul.f32 1.0, %v2104
      %v2106 = vrcp.pop %v1950
      %v2107 = vmul.f32 %v1950, %v2106
      %v2108 = vsub.f32 1.0, %v2107
      %v2109 = vmul.f32 %v2106, %v2108
      %v2110 = vadd.f32 %v2106, %v2109
      %vm2111 = vweird.f32 %v1950
      %vm2112 = vweird.f32 %v2106
      %vm2113 = vmor %vm2111, %vm2112
      %v2114 = vsel %vm2113, %v2106, %v2110
      %v2115 = vand.u32 2147483647, %v1950
      %vm2116 = vcmp.eq.f32.partialorder %v2115, 8.507059e+37
      %v2117 = vand.u32 %v1950, 2147483648
      %v2118 = vor.u32 1.1754944e-38, %v2117
      %v2119 = vsel %vm2116, %v2118, %v2114
      %v2120 = vmul.f32 1.0, %v2119
      %v2121 = vrcp.pop %v1951
      %v2122 = vmul.f32 %v1951, %v2121
      %v2123 = vsub.f32 1.0, %v2122
      %v2124 = vmul.f32 %v2121, %v2123
      %v2125 = vadd.f32 %v2121, %v2124
      %vm2126 = vweird.f32 %v1951
      %vm2127 = vweird.f32 %v2121
      %vm2128 = vmor %vm2126, %vm2127
      %v2129 = vsel %vm2128, %v2121, %v2125
      %v2130 = vand.u32 2147483647, %v1951
      %vm2131 = vcmp.eq.f32.partialorder %v2130, 8.507059e+37
      %v2132 = vand.u32 %v1951, 2147483648
      %v2133 = vor.u32 1.1754944e-38, %v2132
      %v2134 = vsel %vm2131, %v2133, %v2129
      %v2135 = vmul.f32 1.0, %v2134
      %v2136 = vrcp.pop %v1952
      %v2137 = vmul.f32 %v1952, %v2136
      %v2138 = vsub.f32 1.0, %v2137
      %v2139 = vmul.f32 %v2136, %v2138
      %v2140 = vadd.f32 %v2136, %v2139
      %vm2141 = vweird.f32 %v1952
      %vm2142 = vweird.f32 %v2136
      %vm2143 = vmor %vm2141, %vm2142
      %v2144 = vsel %vm2143, %v2136, %v2140
      %v2145 = vand.u32 2147483647, %v1952
      %vm2146 = vcmp.eq.f32.partialorder %v2145, 8.507059e+37
      %v2147 = vand.u32 %v1952, 2147483648
      %v2148 = vor.u32 1.1754944e-38, %v2147
      %v2149 = vsel %vm2146, %v2148, %v2144
      %v2150 = vmul.f32 1.0, %v2149
      %v2151 = vrcp.pop %v1953
      %v2152 = vmul.f32 %v1953, %v2151
      %v2153 = vsub.f32 1.0, %v2152
      %v2154 = vmul.f32 %v2151, %v2153
      %v2155 = vadd.f32 %v2151, %v2154
      %vm2156 = vweird.f32 %v1953
      %vm2157 = vweird.f32 %v2151
      %vm2158 = vmor %vm2156, %vm2157
      %v2159 = vsel %vm2158, %v2151, %v2155
      %v2160 = vand.u32 2147483647, %v1953
      %vm2161 = vcmp.eq.f32.partialorder %v2160, 8.507059e+37
      %v2162 = vand.u32 %v1953, 2147483648
      %v2163 = vor.u32 1.1754944e-38, %v2162
      %v2164 = vsel %vm2161, %v2163, %v2159
      %v2165 = vmul.f32 1.0, %v2164
      %v2166 = vrcp.pop %v1954
      %v2167 = vmul.f32 %v1954, %v2166
      %v2168 = vsub.f32 1.0, %v2167
      %v2169 = vmul.f32 %v2166, %v2168
      %v2170 = vadd.f32 %v2166, %v2169
      %vm2171 = vweird.f32 %v1954
      %vm2172 = vweird.f32 %v2166
      %vm2173 = vmor %vm2171, %vm2172
      %v2174 = vsel %vm2173, %v2166, %v2170
      %v2175 = vand.u32 2147483647, %v1954
      %vm2176 = vcmp.eq.f32.partialorder %v2175, 8.507059e+37
      %v2177 = vand.u32 %v1954, 2147483648
      %v2178 = vor.u32 1.1754944e-38, %v2177
      %v2179 = vsel %vm2176, %v2178, %v2174
      %v2180 = vmul.f32 1.0, %v2179
      %v2181 = vrcp.pop %v1955
      %v2182 = vmul.f32 %v1955, %v2181
      %v2183 = vsub.f32 1.0, %v2182
      %v2184 = vmul.f32 %v2181, %v2183
      %v2185 = vadd.f32 %v2181, %v2184
      %vm2186 = vweird.f32 %v1955
      %vm2187 = vweird.f32 %v2181
      %vm2188 = vmor %vm2186, %vm2187
      %v2189 = vsel %vm2188, %v2181, %v2185
      %v2190 = vand.u32 2147483647, %v1955
      %vm2191 = vcmp.eq.f32.partialorder %v2190, 8.507059e+37
      %v2192 = vand.u32 %v1955, 2147483648
      %v2193 = vor.u32 1.1754944e-38, %v2192
      %v2194 = vsel %vm2191, %v2193, %v2189
      %v2195 = vmul.f32 1.0, %v2194
      %v2196 = vadd.f32 %v1970, 1.0
      %v2197 = vadd.f32 %v1985, 1.0
      %v2198 = vadd.f32 %v2000, 1.0
      %v2199 = vadd.f32 %v2015, 1.0
      %v2200 = vadd.f32 %v2030, 1.0
      %v2201 = vadd.f32 %v2045, 1.0
      %v2202 = vadd.f32 %v2060, 1.0
      %v2203 = vadd.f32 %v2075, 1.0
      %v2204 = vadd.f32 %v2090, 1.0
      %v2205 = vadd.f32 %v2105, 1.0
      %v2206 = vadd.f32 %v2120, 1.0
      %v2207 = vadd.f32 %v2135, 1.0
      %v2208 = vadd.f32 %v2150, 1.0
      %v2209 = vadd.f32 %v2165, 1.0
      %v2210 = vadd.f32 %v2180, 1.0
      %v2211 = vadd.f32 %v2195, 1.0
      %v2212 = vmul.f32 %v2196, %v524
      %v2213 = vmul.f32 %v2197, %v525
      %v2214 = vmul.f32 %v2198, %v526
      %v2215 = vmul.f32 %v2199, %v527
      %v2216 = vmul.f32 %v2200, %v528
      %v2217 = vmul.f32 %v2201, %v529
      %v2218 = vmul.f32 %v2202, %v530
      %v2219 = vmul.f32 %v2203, %v531
      %v2220 = vmul.f32 %v2204, %v532
      %v2221 = vmul.f32 %v2205, %v533
      %v2222 = vmul.f32 %v2206, %v534
      %v2223 = vmul.f32 %v2207, %v535
      %v2224 = vmul.f32 %v2208, %v536
      %v2225 = vmul.f32 %v2209, %v537
      %v2226 = vmul.f32 %v2210, %v538
      %v2227 = vmul.f32 %v2211, %v539
      %2228 = vst [vmem:[%s523] sm:$0xff] %v2212
      %2229 = vst [vmem:[%s523 + $0x8] sm:$0xff] %v2213
      %2230 = vst [vmem:[%s523 + $0x10] sm:$0xff] %v2214
      %2231 = vst [vmem:[%s523 + $0x18] sm:$0xff] %v2215
      %2232 = vst [vmem:[%s523 + $0x20] sm:$0xff] %v2216
      %2233 = vst [vmem:[%s523 + $0x28] sm:$0xff] %v2217
      %2234 = vst [vmem:[%s523 + $0x30] sm:$0xff] %v2218
      %2235 = vst [vmem:[%s523 + $0x38] sm:$0xff] %v2219
      %2236 = vst [vmem:[%s523 + $0x40] sm:$0xff] %v2220
      %2237 = vst [vmem:[%s523 + $0x48] sm:$0xff] %v2221
      %2238 = vst [vmem:[%s523 + $0x50] sm:$0xff] %v2222
      %2239 = vst [vmem:[%s523 + $0x58] sm:$0xff] %v2223
      %2240 = vst [vmem:[%s523 + $0x60] sm:$0xff] %v2224
      %2241 = vst [vmem:[%s523 + $0x68] sm:$0xff] %v2225
      %2242 = vst [vmem:[%s523 + $0x70] sm:$0xff] %v2226
      %2243 = vst [vmem:[%s523 + $0x78] sm:$0xff] %v2227
      %p2244 = scmp.lt.s32.totalorder %s29, 1
      %s2245 = scalar_select %p2244, %s29, 1
      %s2246 = smul.addr %s2245, 16
      %s2247 = smul.addr %s2246, 8
      %s2248 = scalar_lea.vmem %s16, %s2247
      // Predicated region
      $region85: #{sea_forward.1} parent=83 // pred_check
        %p2249 = pneg %p388
      $region86: #{sea_forward.1} parent=83 // pred_check_branch
        %2251 = sbr.rel (%p2249) target = $region88
      $region87: #{sea_forward.1} parent=83 // pred_region
        _
      $region88: #{sea_forward.1} parent=83 // pred_fallthru
        _
    $region84: #{sea_forward.1} parent=5 // pred_fallthru
      _
    %p2252 = scmp.le.s32.totalorder 2, %s24
    // Predicated region
    $region89: #{sea_forward.1} parent=5 // pred_check
      %p2253 = pneg %p2252
    $region90: #{sea_forward.1} parent=5 // pred_check_branch
      %2255 = sbr.rel (%p2253) target = $region92
    $region91: #{sea_forward.1} parent=5 // pred_region
      %s2256 = ssub.s32 %s24, 2
      // Predicated region
      $region93: #{sea_forward.1} parent=91 // pred_check
        %p2257 = pneg %p394
      $region94: #{sea_forward.1} parent=91 // pred_check_branch
        %2259 = sbr.rel (%p2257) target = $region96
      $region95: #{sea_forward.1} parent=91 // pred_region
        %p2260 = scmp.lt.s32.totalorder %s30, 1
        %s2261 = scalar_select %p2260, %s30, 1
        %s2262 = smul.addr %s2261, 16
        %s2263 = smul.addr %s2262, 8
        %s2264 = scalar_lea.vmem %s16, %s2263
      $region96: #{sea_forward.1} parent=91 // pred_fallthru
        _
    $region92: #{sea_forward.1} parent=5 // pred_fallthru
      _
  $region6: #{sea_forward.1} parent=0 // loop_footer
    %s28 = sadd.s32 1, %s24
  $region7: #{sea_forward.1} parent=0 // loop_footer_branch
    %23 = sbr.rel target = $region3
  $region8: #{sea_forward.1} parent=0 // loop_exit
    _

</llo_original>
